<compile_context>
chip_gen: v7x
topology: tpu7x:2x2x1
jax: 0.10.0
libtpu: 0.0.40
codegen_flags: <defaults>
</compile_context>

<pallas_src>
import functools

import jax
import jax.numpy as jnp
from jax import lax
from jax.experimental import pallas as pl
from jax.experimental.pallas import tpu as pltpu

# "-inf" sentinel for masked max-pool taps (f32).  Safe because every 5-tap
# window always contains its own, never-masked, center element and post-SiLU
# activations are >= -0.2785, so the sentinel can never propagate to an output.
# (If bf16 pool math is ever introduced this must become the lowest finite bf16.)
_NEG = -3.0e38


# ----------------------------- Pallas kernel -------------------------------

def _sppf_kernel(x_ref, w1_ref, b1_ref, w2s_ref, b2_ref, o_ref, *, H, W, c_):
    """One grid step: Nb whole images laid out as a (C1, Nb*H*W) lane-dense slab."""
    x = x_ref[...]                                   # (C1, Nb*HW) f32
    lanes = x.shape[-1]
    HW = H * W

    # ---- cv1: folded 1x1 conv + BN, then SiLU ------------------------------
    a = jnp.dot(w1_ref[...], x, preferred_element_type=jnp.float32) + b1_ref[...]
    y = a * jax.nn.sigmoid(a)                        # (c_, lanes)
    # (optional EUP-slot variant: a * pl.reciprocal(1 + jnp.exp(-a), approx=True))

    # ---- boundary masks, hoisted once and reused by all three pools --------
    lane = lax.broadcasted_iota(jnp.int32, (c_, lanes), 1)
    q = (lane & (HW - 1)) if (HW & (HW - 1) == 0) else (lane % HW)  # offset in image
    if W & (W - 1) == 0:
        w_idx = q & (W - 1)
        h_idx = q >> (W.bit_length() - 1)
    else:
        w_idx = q % W
        h_idx = q // W
    w_mask = {d: jnp.logical_and(w_idx + d >= 0, w_idx + d < W) for d in (-2, -1, 1, 2)}
    h_mask = {d: jnp.logical_and(h_idx + d >= 0, h_idx + d < H) for d in (-2, -1, 1, 2)}

    def shift(t, s):
        # shifted[:, p] = t[:, p + s]; wrap-around is killed by the masks.
        return pltpu.roll(t, (-s) % lanes, axis=1)

    def pool5(t):
        # Separable 5x5 max pool, stride 1, pad 2 (-inf): 5-wide max along W
        # (lane shifts +-1/+-2, masked at row boundaries), then along H (lane
        # shifts +-W/+-2W, masked at image boundaries so slab images never mix).
        m = t
        for d in (-2, -1, 1, 2):
            m = jnp.maximum(m, jnp.where(w_mask[d], shift(t, d), _NEG))
        out = m
        for d in (-2, -1, 1, 2):
            out = jnp.maximum(out, jnp.where(h_mask[d], shift(m, d * W), _NEG))
        return out

    # ---- chained pools with cv2 accumulated as partial matmuls -------------
    # No (4*c_, lanes) concat is materialized: each y_i feeds its own
    # (c2, c_) x (c_, lanes) matmul right after it is produced.
    acc = jnp.dot(w2s_ref[0], y, preferred_element_type=jnp.float32)
    for i in range(1, 4):
        y = pool5(y)
        acc = acc + jnp.dot(w2s_ref[i], y, preferred_element_type=jnp.float32)

    a2 = acc + b2_ref[...]
    o_ref[...] = (a2 * jax.nn.sigmoid(a2)).astype(o_ref.dtype)


# ----------------------------- wrapper --------------------------------------

def _pick_images_per_step(n, max_per_step=8):
    """Largest divisor of n that is <= max_per_step while keeping >= 2 grid
    steps when n >= 2 (so both v7x TensorCores get work)."""
    best = 1
    for d in range(1, min(n, max_per_step) + 1):
        if n % d == 0 and (n // d >= 2 or n == 1):
            best = d
    return best


def sppf_forward(x_nchw, params, images_per_step=None):
    """SPPF forward (eval-mode BN).  x: (N, C1, H, W) float32, NCHW like PyTorch."""
    N, C1, H, W = x_nchw.shape
    HW = H * W
    c_ = params["w1"].shape[0]
    c2 = params["w2"].shape[0]
    assert params["w2"].shape[1] == 4 * c_

    nb = images_per_step or _pick_images_per_step(N)
    assert N % nb == 0
    if (nb * HW) % 128 != 0:
        nb = N  # full-extent lane block; TODO(synk): pad HW to a lane multiple instead

    # Lane-dense relayout: all images concatenated along the lane axis.  This
    # transpose is wrapper-side layout plumbing done once by XLA in HBM.
    x_cl = jnp.transpose(x_nchw.reshape(N, C1, HW), (1, 0, 2)).reshape(C1, N * HW)
    # cv2 weight pre-split per pool stage -> (4, c2, c_) so the kernel uses a
    # cheap leading-axis index instead of lane-offset slices of (c2, 4*c_).
    w2s = jnp.transpose(params["w2"].reshape(c2, 4, c_), (1, 0, 2))

    out = pl.pallas_call(
        functools.partial(_sppf_kernel, H=H, W=W, c_=c_),
        out_shape=jax.ShapeDtypeStruct((c2, N * HW), x_nchw.dtype),
        grid_spec=pltpu.PrefetchScalarGridSpec(
            num_scalar_prefetch=0,
            grid=(N // nb,),
            in_specs=[
                pl.BlockSpec((C1, nb * HW), lambda n: (0, n)),   # Nb-image slab
                pl.BlockSpec((c_, C1), lambda n: (0, 0)),        # cv1 weight (BN folded)
                pl.BlockSpec((c_, 1), lambda n: (0, 0)),         # cv1 bias
                pl.BlockSpec((4, c2, c_), lambda n: (0, 0, 0)),  # cv2 weight, pre-split
                pl.BlockSpec((c2, 1), lambda n: (0, 0)),         # cv2 bias
            ],
            out_specs=pl.BlockSpec((c2, nb * HW), lambda n: (0, n)),
        ),
        compiler_params=pltpu.CompilerParams(
            dimension_semantics=("parallel",)),  # >=2 steps shard over v7x's 2 TCs
    )(x_cl, params["w1"], params["b1"], w2s, params["b2"])

    return jnp.transpose(out.reshape(c2, N, H, W), (1, 0, 2, 3))


# ----------------------------- parameter setup ------------------------------

def fold_conv_bn(w_oihw, gamma, beta, mean, var, eps=1e-5):
    """Fold eval-mode BatchNorm2d into the preceding bias-free conv."""
    scale = gamma / jnp.sqrt(var + eps)
    w = w_oihw * scale[:, None, None, None]
    b = beta - mean * scale
    return w, b


def make_conv1x1_params(key, cin, cout):
    k1, k2, k3, k4, k5 = jax.random.split(key, 5)
    w = jax.random.normal(k1, (cout, cin, 1, 1), jnp.float32) * 0.1
    gamma = 1.0 + 0.1 * jax.random.normal(k2, (cout,), jnp.float32)
    beta = 0.1 * jax.random.normal(k3, (cout,), jnp.float32)
    mean = 0.1 * jax.random.normal(k4, (cout,), jnp.float32)
    var = 1.0 + 0.1 * jnp.abs(jax.random.normal(k5, (cout,), jnp.float32))
    wf, bf = fold_conv_bn(w, gamma, beta, mean, var)
    return wf[:, :, 0, 0], bf.reshape(cout, 1)               # (cout, cin), (cout, 1)


def init_sppf_params(key, c1, c2):
    c_ = c1 // 2
    k1, k2 = jax.random.split(key)
    w1, b1 = make_conv1x1_params(k1, c1, c_)
    w2, b2 = make_conv1x1_params(k2, 4 * c_, c2)
    return dict(w1=w1, b1=b1, w2=w2, b2=b2)


# ----------------------------- pure-JAX reference ---------------------------

def sppf_reference(x_nchw, params, k=5):
    """Reference SPPF forward (eval mode) with plain XLA ops, NCHW."""
    def conv1x1_silu(t, w, b):
        y = jnp.einsum("oc,nchw->nohw", w, t,
                       precision=lax.Precision.HIGHEST) + b[:, 0][None, :, None, None]
        return y * jax.nn.sigmoid(y)

    def mp(t):
        return lax.reduce_window(
            t, -jnp.inf, lax.max,
            window_dimensions=(1, 1, k, k),
            window_strides=(1, 1, 1, 1),
            padding=((0, 0), (0, 0), (k // 2, k // 2), (k // 2, k // 2)))

    y0 = conv1x1_silu(x_nchw, params["w1"], params["b1"])
    y1 = mp(y0)
    y2 = mp(y1)
    y3 = mp(y2)
    return conv1x1_silu(jnp.concatenate([y0, y1, y2, y3], axis=1),
                        params["w2"], params["b2"])


# ----------------------------- main ------------------------------------------

if __name__ == "__main__":
    key = jax.random.PRNGKey(0)
    kx, kp = jax.random.split(key)

    # SPPF(c1=16, c2=16, k=5) -> c_ = 8; input (N, C1, H, W) = (4, 16, 16, 16)
    # N=4 so each grid step carries 2 images and the grid still has 2 parallel steps.
    N, C1, H, W = 4, 16, 16, 16
    C2 = 16
    x = jax.random.normal(kx, (N, C1, H, W), jnp.float32)
    params = init_sppf_params(kp, C1, C2)

    out = jax.block_until_ready(sppf_forward(x, params))
    assert out.shape == (N, C2, H, W), out.shape

    ref = jax.block_until_ready(sppf_reference(x, params))
    max_err = float(jnp.max(jnp.abs(out - ref)))
    # All-f32 path: expected error ~1e-5 (only MXU multi-pass / transcendental
    # rounding).  2e-3 leaves headroom for matmul rounding while still catching
    # any boundary-mask / shift-sign bug, which produces O(0.1..1) errors.
    assert max_err < 2e-3, f"max abs error vs reference: {max_err}"

    print("KERNEL_OK")
</pallas_src>

<mosaic_0001>
module attributes {stable_mosaic.version = 11 : i64} {
  func.func @_sppf_kernel(%arg0: i32, %arg1: memref<16x512xf32, #tpu.memory_space<vmem>>, %arg2: memref<8x16xf32, #tpu.memory_space<vmem>>, %arg3: memref<8x1xf32, #tpu.memory_space<vmem>>, %arg4: memref<4x16x8xf32, #tpu.memory_space<vmem>>, %arg5: memref<16x1xf32, #tpu.memory_space<vmem>>, %arg6: memref<16x512xf32, #tpu.memory_space<vmem>>) attributes {dimension_semantics = [#tpu.dimension_semantics<parallel>], iteration_bounds = array<i64: 2>, scalar_prefetch = 0 : i64, scratch_operands = 0 : i64, tpu.core_type = #tpu.core_type<tc>, window_params = [{transform_indices = @transform_0, window_bounds = array<i64: 16, 512>}, {pipeline_mode = #tpu.pipeline_mode<synchronous>, transform_indices = @transform_1, window_bounds = array<i64: 8, 16>}, {pipeline_mode = #tpu.pipeline_mode<synchronous>, transform_indices = @transform_2, window_bounds = array<i64: 8, 1>}, {pipeline_mode = #tpu.pipeline_mode<synchronous>, transform_indices = @transform_3, window_bounds = array<i64: 4, 16, 8>}, {pipeline_mode = #tpu.pipeline_mode<synchronous>, transform_indices = @transform_4, window_bounds = array<i64: 16, 1>}, {transform_indices = @transform_5, window_bounds = array<i64: 16, 512>}]} {
    %c0 = arith.constant 0 : index
    %c0_0 = arith.constant 0 : index
    %0 = vector.load %arg1[%c0, %c0_0] : memref<16x512xf32, #tpu.memory_space<vmem>>, vector<16x512xf32>
    %c0_1 = arith.constant 0 : index
    %c0_2 = arith.constant 0 : index
    %1 = vector.load %arg2[%c0_1, %c0_2] : memref<8x16xf32, #tpu.memory_space<vmem>>, vector<8x16xf32>
    %cst = arith.constant dense<0.000000e+00> : vector<8x512xf32>
    %2 = tpu.matmul %1, %0, %cst {dimension_numbers = #tpu.dot_dimension_numbers<[1], [0], [0], [1], [0, 0, 1, 1], [], []>} : vector<8x16xf32>, vector<16x512xf32>, vector<8x512xf32> -> vector<8x512xf32>
    %c0_3 = arith.constant 0 : index
    %c0_4 = arith.constant 0 : index
    %3 = vector.load %arg3[%c0_3, %c0_4] : memref<8x1xf32, #tpu.memory_space<vmem>>, vector<8x1xf32>
    %4 = vector.broadcast %3 : vector<8x1xf32> to vector<8x512xf32>
    %5 = arith.addf %2, %4 : vector<8x512xf32>
    %6 = arith.negf %5 : vector<8x512xf32>
    %7 = math.exp %6 : vector<8x512xf32>
    %cst_5 = arith.constant 1.000000e+00 : f32
    %8 = vector.broadcast %cst_5 : f32 to vector<8x512xf32>
    %9 = arith.addf %8, %7 : vector<8x512xf32>
    %10 = arith.divf %8, %9 : vector<8x512xf32>
    %11 = arith.mulf %5, %10 : vector<8x512xf32>
    %12 = tpu.iota {dimensions = array<i32: 1>} : vector<8x512xi32>
    %c255_i32 = arith.constant 255 : i32
    %13 = vector.broadcast %c255_i32 : i32 to vector<8x512xi32>
    %14 = arith.andi %12, %13 : vector<8x512xi32>
    %c15_i32 = arith.constant 15 : i32
    %15 = vector.broadcast %c15_i32 : i32 to vector<8x512xi32>
    %16 = arith.andi %14, %15 : vector<8x512xi32>
    %c4_i32 = arith.constant 4 : i32
    %17 = vector.broadcast %c4_i32 : i32 to vector<8x512xi32>
    %18 = arith.shrsi %14, %17 : vector<8x512xi32>
    %c-2_i32 = arith.constant -2 : i32
    %19 = vector.broadcast %c-2_i32 : i32 to vector<8x512xi32>
    %20 = arith.addi %16, %19 : vector<8x512xi32>
    %c0_i32 = arith.constant 0 : i32
    %21 = vector.broadcast %c0_i32 : i32 to vector<8x512xi32>
    %22 = arith.cmpi sge, %20, %21 : vector<8x512xi32>
    %c-2_i32_6 = arith.constant -2 : i32
    %23 = vector.broadcast %c-2_i32_6 : i32 to vector<8x512xi32>
    %24 = arith.addi %16, %23 : vector<8x512xi32>
    %c16_i32 = arith.constant 16 : i32
    %25 = vector.broadcast %c16_i32 : i32 to vector<8x512xi32>
    %26 = arith.cmpi slt, %24, %25 : vector<8x512xi32>
    %27 = arith.andi %22, %26 : vector<8x512xi1>
    %c-1_i32 = arith.constant -1 : i32
    %28 = vector.broadcast %c-1_i32 : i32 to vector<8x512xi32>
    %29 = arith.addi %16, %28 : vector<8x512xi32>
    %c0_i32_7 = arith.constant 0 : i32
    %30 = vector.broadcast %c0_i32_7 : i32 to vector<8x512xi32>
    %31 = arith.cmpi sge, %29, %30 : vector<8x512xi32>
    %c-1_i32_8 = arith.constant -1 : i32
    %32 = vector.broadcast %c-1_i32_8 : i32 to vector<8x512xi32>
    %33 = arith.addi %16, %32 : vector<8x512xi32>
    %c16_i32_9 = arith.constant 16 : i32
    %34 = vector.broadcast %c16_i32_9 : i32 to vector<8x512xi32>
    %35 = arith.cmpi slt, %33, %34 : vector<8x512xi32>
    %36 = arith.andi %31, %35 : vector<8x512xi1>
    %c1_i32 = arith.constant 1 : i32
    %37 = vector.broadcast %c1_i32 : i32 to vector<8x512xi32>
    %38 = arith.addi %16, %37 : vector<8x512xi32>
    %c0_i32_10 = arith.constant 0 : i32
    %39 = vector.broadcast %c0_i32_10 : i32 to vector<8x512xi32>
    %40 = arith.cmpi sge, %38, %39 : vector<8x512xi32>
    %c1_i32_11 = arith.constant 1 : i32
    %41 = vector.broadcast %c1_i32_11 : i32 to vector<8x512xi32>
    %42 = arith.addi %16, %41 : vector<8x512xi32>
    %c16_i32_12 = arith.constant 16 : i32
    %43 = vector.broadcast %c16_i32_12 : i32 to vector<8x512xi32>
    %44 = arith.cmpi slt, %42, %43 : vector<8x512xi32>
    %45 = arith.andi %40, %44 : vector<8x512xi1>
    %c2_i32 = arith.constant 2 : i32
    %46 = vector.broadcast %c2_i32 : i32 to vector<8x512xi32>
    %47 = arith.addi %16, %46 : vector<8x512xi32>
    %c0_i32_13 = arith.constant 0 : i32
    %48 = vector.broadcast %c0_i32_13 : i32 to vector<8x512xi32>
    %49 = arith.cmpi sge, %47, %48 : vector<8x512xi32>
    %c2_i32_14 = arith.constant 2 : i32
    %50 = vector.broadcast %c2_i32_14 : i32 to vector<8x512xi32>
    %51 = arith.addi %16, %50 : vector<8x512xi32>
    %c16_i32_15 = arith.constant 16 : i32
    %52 = vector.broadcast %c16_i32_15 : i32 to vector<8x512xi32>
    %53 = arith.cmpi slt, %51, %52 : vector<8x512xi32>
    %54 = arith.andi %49, %53 : vector<8x512xi1>
    %c-2_i32_16 = arith.constant -2 : i32
    %55 = vector.broadcast %c-2_i32_16 : i32 to vector<8x512xi32>
    %56 = arith.addi %18, %55 : vector<8x512xi32>
    %c0_i32_17 = arith.constant 0 : i32
    %57 = vector.broadcast %c0_i32_17 : i32 to vector<8x512xi32>
    %58 = arith.cmpi sge, %56, %57 : vector<8x512xi32>
    %c-2_i32_18 = arith.constant -2 : i32
    %59 = vector.broadcast %c-2_i32_18 : i32 to vector<8x512xi32>
    %60 = arith.addi %18, %59 : vector<8x512xi32>
    %c16_i32_19 = arith.constant 16 : i32
    %61 = vector.broadcast %c16_i32_19 : i32 to vector<8x512xi32>
    %62 = arith.cmpi slt, %60, %61 : vector<8x512xi32>
    %63 = arith.andi %58, %62 : vector<8x512xi1>
    %c-1_i32_20 = arith.constant -1 : i32
    %64 = vector.broadcast %c-1_i32_20 : i32 to vector<8x512xi32>
    %65 = arith.addi %18, %64 : vector<8x512xi32>
    %c0_i32_21 = arith.constant 0 : i32
    %66 = vector.broadcast %c0_i32_21 : i32 to vector<8x512xi32>
    %67 = arith.cmpi sge, %65, %66 : vector<8x512xi32>
    %c-1_i32_22 = arith.constant -1 : i32
    %68 = vector.broadcast %c-1_i32_22 : i32 to vector<8x512xi32>
    %69 = arith.addi %18, %68 : vector<8x512xi32>
    %c16_i32_23 = arith.constant 16 : i32
    %70 = vector.broadcast %c16_i32_23 : i32 to vector<8x512xi32>
    %71 = arith.cmpi slt, %69, %70 : vector<8x512xi32>
    %72 = arith.andi %67, %71 : vector<8x512xi1>
    %c1_i32_24 = arith.constant 1 : i32
    %73 = vector.broadcast %c1_i32_24 : i32 to vector<8x512xi32>
    %74 = arith.addi %18, %73 : vector<8x512xi32>
    %c0_i32_25 = arith.constant 0 : i32
    %75 = vector.broadcast %c0_i32_25 : i32 to vector<8x512xi32>
    %76 = arith.cmpi sge, %74, %75 : vector<8x512xi32>
    %c1_i32_26 = arith.constant 1 : i32
    %77 = vector.broadcast %c1_i32_26 : i32 to vector<8x512xi32>
    %78 = arith.addi %18, %77 : vector<8x512xi32>
    %c16_i32_27 = arith.constant 16 : i32
    %79 = vector.broadcast %c16_i32_27 : i32 to vector<8x512xi32>
    %80 = arith.cmpi slt, %78, %79 : vector<8x512xi32>
    %81 = arith.andi %76, %80 : vector<8x512xi1>
    %c2_i32_28 = arith.constant 2 : i32
    %82 = vector.broadcast %c2_i32_28 : i32 to vector<8x512xi32>
    %83 = arith.addi %18, %82 : vector<8x512xi32>
    %c0_i32_29 = arith.constant 0 : i32
    %84 = vector.broadcast %c0_i32_29 : i32 to vector<8x512xi32>
    %85 = arith.cmpi sge, %83, %84 : vector<8x512xi32>
    %c2_i32_30 = arith.constant 2 : i32
    %86 = vector.broadcast %c2_i32_30 : i32 to vector<8x512xi32>
    %87 = arith.addi %18, %86 : vector<8x512xi32>
    %c16_i32_31 = arith.constant 16 : i32
    %88 = vector.broadcast %c16_i32_31 : i32 to vector<8x512xi32>
    %89 = arith.cmpi slt, %87, %88 : vector<8x512xi32>
    %90 = arith.andi %85, %89 : vector<8x512xi1>
    %c0_32 = arith.constant 0 : index
    %c0_33 = arith.constant 0 : index
    %c0_34 = arith.constant 0 : index
    %91 = vector.load %arg4[%c0_32, %c0_33, %c0_34] : memref<4x16x8xf32, #tpu.memory_space<vmem>>, vector<1x16x8xf32>
    %92 = vector.shape_cast %91 : vector<1x16x8xf32> to vector<16x8xf32>
    %cst_35 = arith.constant dense<0.000000e+00> : vector<16x512xf32>
    %93 = tpu.matmul %92, %11, %cst_35 {dimension_numbers = #tpu.dot_dimension_numbers<[1], [0], [0], [1], [0, 0, 1, 1], [], []>} : vector<16x8xf32>, vector<8x512xf32>, vector<16x512xf32> -> vector<16x512xf32>
    %c2_i32_36 = arith.constant 2 : i32
    %94 = tpu.dynamic_rotate %11 by %c2_i32_36 dim 1 : vector<8x512xf32>, i32 -> vector<8x512xf32>
    %cst_37 = arith.constant -3.000000e+38 : f32
    %95 = vector.broadcast %cst_37 : f32 to vector<8x512xf32>
    %96 = arith.select %27, %94, %95 : vector<8x512xi1>, vector<8x512xf32>
    %97 = arith.maximumf %11, %96 : vector<8x512xf32>
    %c1_i32_38 = arith.constant 1 : i32
    %98 = tpu.dynamic_rotate %11 by %c1_i32_38 dim 1 : vector<8x512xf32>, i32 -> vector<8x512xf32>
    %cst_39 = arith.constant -3.000000e+38 : f32
    %99 = vector.broadcast %cst_39 : f32 to vector<8x512xf32>
    %100 = arith.select %36, %98, %99 : vector<8x512xi1>, vector<8x512xf32>
    %101 = arith.maximumf %97, %100 : vector<8x512xf32>
    %c511_i32 = arith.constant 511 : i32
    %102 = tpu.dynamic_rotate %11 by %c511_i32 dim 1 : vector<8x512xf32>, i32 -> vector<8x512xf32>
    %cst_40 = arith.constant -3.000000e+38 : f32
    %103 = vector.broadcast %cst_40 : f32 to vector<8x512xf32>
    %104 = arith.select %45, %102, %103 : vector<8x512xi1>, vector<8x512xf32>
    %105 = arith.maximumf %101, %104 : vector<8x512xf32>
    %c510_i32 = arith.constant 510 : i32
    %106 = tpu.dynamic_rotate %11 by %c510_i32 dim 1 : vector<8x512xf32>, i32 -> vector<8x512xf32>
    %cst_41 = arith.constant -3.000000e+38 : f32
    %107 = vector.broadcast %cst_41 : f32 to vector<8x512xf32>
    %108 = arith.select %54, %106, %107 : vector<8x512xi1>, vector<8x512xf32>
    %109 = arith.maximumf %105, %108 : vector<8x512xf32>
    %c32_i32 = arith.constant 32 : i32
    %110 = tpu.dynamic_rotate %109 by %c32_i32 dim 1 : vector<8x512xf32>, i32 -> vector<8x512xf32>
    %cst_42 = arith.constant -3.000000e+38 : f32
    %111 = vector.broadcast %cst_42 : f32 to vector<8x512xf32>
    %112 = arith.select %63, %110, %111 : vector<8x512xi1>, vector<8x512xf32>
    %113 = arith.maximumf %109, %112 : vector<8x512xf32>
    %c16_i32_43 = arith.constant 16 : i32
    %114 = tpu.dynamic_rotate %109 by %c16_i32_43 dim 1 : vector<8x512xf32>, i32 -> vector<8x512xf32>
    %cst_44 = arith.constant -3.000000e+38 : f32
    %115 = vector.broadcast %cst_44 : f32 to vector<8x512xf32>
    %116 = arith.select %72, %114, %115 : vector<8x512xi1>, vector<8x512xf32>
    %117 = arith.maximumf %113, %116 : vector<8x512xf32>
    %c496_i32 = arith.constant 496 : i32
    %118 = tpu.dynamic_rotate %109 by %c496_i32 dim 1 : vector<8x512xf32>, i32 -> vector<8x512xf32>
    %cst_45 = arith.constant -3.000000e+38 : f32
    %119 = vector.broadcast %cst_45 : f32 to vector<8x512xf32>
    %120 = arith.select %81, %118, %119 : vector<8x512xi1>, vector<8x512xf32>
    %121 = arith.maximumf %117, %120 : vector<8x512xf32>
    %c480_i32 = arith.constant 480 : i32
    %122 = tpu.dynamic_rotate %109 by %c480_i32 dim 1 : vector<8x512xf32>, i32 -> vector<8x512xf32>
    %cst_46 = arith.constant -3.000000e+38 : f32
    %123 = vector.broadcast %cst_46 : f32 to vector<8x512xf32>
    %124 = arith.select %90, %122, %123 : vector<8x512xi1>, vector<8x512xf32>
    %125 = arith.maximumf %121, %124 : vector<8x512xf32>
    %c1 = arith.constant 1 : index
    %c0_47 = arith.constant 0 : index
    %c0_48 = arith.constant 0 : index
    %126 = vector.load %arg4[%c1, %c0_47, %c0_48] : memref<4x16x8xf32, #tpu.memory_space<vmem>>, vector<1x16x8xf32>
    %127 = vector.shape_cast %126 : vector<1x16x8xf32> to vector<16x8xf32>
    %cst_49 = arith.constant dense<0.000000e+00> : vector<16x512xf32>
    %128 = tpu.matmul %127, %125, %cst_49 {dimension_numbers = #tpu.dot_dimension_numbers<[1], [0], [0], [1], [0, 0, 1, 1], [], []>} : vector<16x8xf32>, vector<8x512xf32>, vector<16x512xf32> -> vector<16x512xf32>
    %129 = arith.addf %93, %128 : vector<16x512xf32>
    %c2_i32_50 = arith.constant 2 : i32
    %130 = tpu.dynamic_rotate %125 by %c2_i32_50 dim 1 : vector<8x512xf32>, i32 -> vector<8x512xf32>
    %cst_51 = arith.constant -3.000000e+38 : f32
    %131 = vector.broadcast %cst_51 : f32 to vector<8x512xf32>
    %132 = arith.select %27, %130, %131 : vector<8x512xi1>, vector<8x512xf32>
    %133 = arith.maximumf %125, %132 : vector<8x512xf32>
    %c1_i32_52 = arith.constant 1 : i32
    %134 = tpu.dynamic_rotate %125 by %c1_i32_52 dim 1 : vector<8x512xf32>, i32 -> vector<8x512xf32>
    %cst_53 = arith.constant -3.000000e+38 : f32
    %135 = vector.broadcast %cst_53 : f32 to vector<8x512xf32>
    %136 = arith.select %36, %134, %135 : vector<8x512xi1>, vector<8x512xf32>
    %137 = arith.maximumf %133, %136 : vector<8x512xf32>
    %c511_i32_54 = arith.constant 511 : i32
    %138 = tpu.dynamic_rotate %125 by %c511_i32_54 dim 1 : vector<8x512xf32>, i32 -> vector<8x512xf32>
    %cst_55 = arith.constant -3.000000e+38 : f32
    %139 = vector.broadcast %cst_55 : f32 to vector<8x512xf32>
    %140 = arith.select %45, %138, %139 : vector<8x512xi1>, vector<8x512xf32>
    %141 = arith.maximumf %137, %140 : vector<8x512xf32>
    %c510_i32_56 = arith.constant 510 : i32
    %142 = tpu.dynamic_rotate %125 by %c510_i32_56 dim 1 : vector<8x512xf32>, i32 -> vector<8x512xf32>
    %cst_57 = arith.constant -3.000000e+38 : f32
    %143 = vector.broadcast %cst_57 : f32 to vector<8x512xf32>
    %144 = arith.select %54, %142, %143 : vector<8x512xi1>, vector<8x512xf32>
    %145 = arith.maximumf %141, %144 : vector<8x512xf32>
    %c32_i32_58 = arith.constant 32 : i32
    %146 = tpu.dynamic_rotate %145 by %c32_i32_58 dim 1 : vector<8x512xf32>, i32 -> vector<8x512xf32>
    %cst_59 = arith.constant -3.000000e+38 : f32
    %147 = vector.broadcast %cst_59 : f32 to vector<8x512xf32>
    %148 = arith.select %63, %146, %147 : vector<8x512xi1>, vector<8x512xf32>
    %149 = arith.maximumf %145, %148 : vector<8x512xf32>
    %c16_i32_60 = arith.constant 16 : i32
    %150 = tpu.dynamic_rotate %145 by %c16_i32_60 dim 1 : vector<8x512xf32>, i32 -> vector<8x512xf32>
    %cst_61 = arith.constant -3.000000e+38 : f32
    %151 = vector.broadcast %cst_61 : f32 to vector<8x512xf32>
    %152 = arith.select %72, %150, %151 : vector<8x512xi1>, vector<8x512xf32>
    %153 = arith.maximumf %149, %152 : vector<8x512xf32>
    %c496_i32_62 = arith.constant 496 : i32
    %154 = tpu.dynamic_rotate %145 by %c496_i32_62 dim 1 : vector<8x512xf32>, i32 -> vector<8x512xf32>
    %cst_63 = arith.constant -3.000000e+38 : f32
    %155 = vector.broadcast %cst_63 : f32 to vector<8x512xf32>
    %156 = arith.select %81, %154, %155 : vector<8x512xi1>, vector<8x512xf32>
    %157 = arith.maximumf %153, %156 : vector<8x512xf32>
    %c480_i32_64 = arith.constant 480 : i32
    %158 = tpu.dynamic_rotate %145 by %c480_i32_64 dim 1 : vector<8x512xf32>, i32 -> vector<8x512xf32>
    %cst_65 = arith.constant -3.000000e+38 : f32
    %159 = vector.broadcast %cst_65 : f32 to vector<8x512xf32>
    %160 = arith.select %90, %158, %159 : vector<8x512xi1>, vector<8x512xf32>
    %161 = arith.maximumf %157, %160 : vector<8x512xf32>
    %c2 = arith.constant 2 : index
    %c0_66 = arith.constant 0 : index
    %c0_67 = arith.constant 0 : index
    %162 = vector.load %arg4[%c2, %c0_66, %c0_67] : memref<4x16x8xf32, #tpu.memory_space<vmem>>, vector<1x16x8xf32>
    %163 = vector.shape_cast %162 : vector<1x16x8xf32> to vector<16x8xf32>
    %cst_68 = arith.constant dense<0.000000e+00> : vector<16x512xf32>
    %164 = tpu.matmul %163, %161, %cst_68 {dimension_numbers = #tpu.dot_dimension_numbers<[1], [0], [0], [1], [0, 0, 1, 1], [], []>} : vector<16x8xf32>, vector<8x512xf32>, vector<16x512xf32> -> vector<16x512xf32>
    %165 = arith.addf %129, %164 : vector<16x512xf32>
    %c2_i32_69 = arith.constant 2 : i32
    %166 = tpu.dynamic_rotate %161 by %c2_i32_69 dim 1 : vector<8x512xf32>, i32 -> vector<8x512xf32>
    %cst_70 = arith.constant -3.000000e+38 : f32
    %167 = vector.broadcast %cst_70 : f32 to vector<8x512xf32>
    %168 = arith.select %27, %166, %167 : vector<8x512xi1>, vector<8x512xf32>
    %169 = arith.maximumf %161, %168 : vector<8x512xf32>
    %c1_i32_71 = arith.constant 1 : i32
    %170 = tpu.dynamic_rotate %161 by %c1_i32_71 dim 1 : vector<8x512xf32>, i32 -> vector<8x512xf32>
    %cst_72 = arith.constant -3.000000e+38 : f32
    %171 = vector.broadcast %cst_72 : f32 to vector<8x512xf32>
    %172 = arith.select %36, %170, %171 : vector<8x512xi1>, vector<8x512xf32>
    %173 = arith.maximumf %169, %172 : vector<8x512xf32>
    %c511_i32_73 = arith.constant 511 : i32
    %174 = tpu.dynamic_rotate %161 by %c511_i32_73 dim 1 : vector<8x512xf32>, i32 -> vector<8x512xf32>
    %cst_74 = arith.constant -3.000000e+38 : f32
    %175 = vector.broadcast %cst_74 : f32 to vector<8x512xf32>
    %176 = arith.select %45, %174, %175 : vector<8x512xi1>, vector<8x512xf32>
    %177 = arith.maximumf %173, %176 : vector<8x512xf32>
    %c510_i32_75 = arith.constant 510 : i32
    %178 = tpu.dynamic_rotate %161 by %c510_i32_75 dim 1 : vector<8x512xf32>, i32 -> vector<8x512xf32>
    %cst_76 = arith.constant -3.000000e+38 : f32
    %179 = vector.broadcast %cst_76 : f32 to vector<8x512xf32>
    %180 = arith.select %54, %178, %179 : vector<8x512xi1>, vector<8x512xf32>
    %181 = arith.maximumf %177, %180 : vector<8x512xf32>
    %c32_i32_77 = arith.constant 32 : i32
    %182 = tpu.dynamic_rotate %181 by %c32_i32_77 dim 1 : vector<8x512xf32>, i32 -> vector<8x512xf32>
    %cst_78 = arith.constant -3.000000e+38 : f32
    %183 = vector.broadcast %cst_78 : f32 to vector<8x512xf32>
    %184 = arith.select %63, %182, %183 : vector<8x512xi1>, vector<8x512xf32>
    %185 = arith.maximumf %181, %184 : vector<8x512xf32>
    %c16_i32_79 = arith.constant 16 : i32
    %186 = tpu.dynamic_rotate %181 by %c16_i32_79 dim 1 : vector<8x512xf32>, i32 -> vector<8x512xf32>
    %cst_80 = arith.constant -3.000000e+38 : f32
    %187 = vector.broadcast %cst_80 : f32 to vector<8x512xf32>
    %188 = arith.select %72, %186, %187 : vector<8x512xi1>, vector<8x512xf32>
    %189 = arith.maximumf %185, %188 : vector<8x512xf32>
    %c496_i32_81 = arith.constant 496 : i32
    %190 = tpu.dynamic_rotate %181 by %c496_i32_81 dim 1 : vector<8x512xf32>, i32 -> vector<8x512xf32>
    %cst_82 = arith.constant -3.000000e+38 : f32
    %191 = vector.broadcast %cst_82 : f32 to vector<8x512xf32>
    %192 = arith.select %81, %190, %191 : vector<8x512xi1>, vector<8x512xf32>
    %193 = arith.maximumf %189, %192 : vector<8x512xf32>
    %c480_i32_83 = arith.constant 480 : i32
    %194 = tpu.dynamic_rotate %181 by %c480_i32_83 dim 1 : vector<8x512xf32>, i32 -> vector<8x512xf32>
    %cst_84 = arith.constant -3.000000e+38 : f32
    %195 = vector.broadcast %cst_84 : f32 to vector<8x512xf32>
    %196 = arith.select %90, %194, %195 : vector<8x512xi1>, vector<8x512xf32>
    %197 = arith.maximumf %193, %196 : vector<8x512xf32>
    %c3 = arith.constant 3 : index
    %c0_85 = arith.constant 0 : index
    %c0_86 = arith.constant 0 : index
    %198 = vector.load %arg4[%c3, %c0_85, %c0_86] : memref<4x16x8xf32, #tpu.memory_space<vmem>>, vector<1x16x8xf32>
    %199 = vector.shape_cast %198 : vector<1x16x8xf32> to vector<16x8xf32>
    %cst_87 = arith.constant dense<0.000000e+00> : vector<16x512xf32>
    %200 = tpu.matmul %199, %197, %cst_87 {dimension_numbers = #tpu.dot_dimension_numbers<[1], [0], [0], [1], [0, 0, 1, 1], [], []>} : vector<16x8xf32>, vector<8x512xf32>, vector<16x512xf32> -> vector<16x512xf32>
    %201 = arith.addf %165, %200 : vector<16x512xf32>
    %c0_88 = arith.constant 0 : index
    %c0_89 = arith.constant 0 : index
    %202 = vector.load %arg5[%c0_88, %c0_89] : memref<16x1xf32, #tpu.memory_space<vmem>>, vector<16x1xf32>
    %203 = vector.broadcast %202 : vector<16x1xf32> to vector<16x512xf32>
    %204 = arith.addf %201, %203 : vector<16x512xf32>
    %205 = arith.negf %204 : vector<16x512xf32>
    %206 = math.exp %205 : vector<16x512xf32>
    %cst_90 = arith.constant 1.000000e+00 : f32
    %207 = vector.broadcast %cst_90 : f32 to vector<16x512xf32>
    %208 = arith.addf %207, %206 : vector<16x512xf32>
    %209 = arith.divf %207, %208 : vector<16x512xf32>
    %210 = arith.mulf %204, %209 : vector<16x512xf32>
    %c0_91 = arith.constant 0 : index
    %c0_92 = arith.constant 0 : index
    %211 = vector.load %arg6[%c0_91, %c0_92] : memref<16x512xf32, #tpu.memory_space<vmem>>, vector<16x512xf32>
    tpu.vector_store %arg6[%c0_91, %c0_92], %210 {strides = array<i32>} : memref<16x512xf32, #tpu.memory_space<vmem>>, vector<16x512xf32>,
    return
  }
  func.func @transform_0(%arg0: i32) -> (i32, i32) {
    %c0_i32 = arith.constant 0 : i32
    %c0_i32_0 = arith.constant 0 : i32
    return %c0_i32, %arg0 : i32, i32
  }
  func.func @transform_1(%arg0: i32) -> (i32, i32) {
    %c0_i32 = arith.constant 0 : i32
    %c0_i32_0 = arith.constant 0 : i32
    %c0_i32_1 = arith.constant 0 : i32
    return %c0_i32, %c0_i32_0 : i32, i32
  }
  func.func @transform_2(%arg0: i32) -> (i32, i32) {
    %c0_i32 = arith.constant 0 : i32
    %c0_i32_0 = arith.constant 0 : i32
    %c0_i32_1 = arith.constant 0 : i32
    return %c0_i32, %c0_i32_0 : i32, i32
  }
  func.func @transform_3(%arg0: i32) -> (i32, i32, i32) {
    %c0_i32 = arith.constant 0 : i32
    %c0_i32_0 = arith.constant 0 : i32
    %c0_i32_1 = arith.constant 0 : i32
    %c0_i32_2 = arith.constant 0 : i32
    return %c0_i32, %c0_i32_0, %c0_i32_1 : i32, i32, i32
  }
  func.func @transform_4(%arg0: i32) -> (i32, i32) {
    %c0_i32 = arith.constant 0 : i32
    %c0_i32_0 = arith.constant 0 : i32
    %c0_i32_1 = arith.constant 0 : i32
    return %c0_i32, %c0_i32_0 : i32, i32
  }
  func.func @transform_5(%arg0: i32) -> (i32, i32) {
    %c0_i32 = arith.constant 0 : i32
    %c0_i32_0 = arith.constant 0 : i32
    return %c0_i32, %arg0 : i32, i32
  }
}

</mosaic_0001>

<llo_original>
// kernel: tpu_custom_call.1
$region0: #{tpu_custom_call.1}
  #allocation0 [shape = 'u32[]', space=smem, size = 0x4, offset = 0x4, fixed_abs, tag = 'smem constant byte address 0x4 - core index']
  #allocation1 [shape = 'u32[144,128]{1,0:T(1,128)}', space=vmem, size = 0x12000, scoped, tag = 'internal scratch']
  %s0 = inlined_call_operand.hbm [shape: f32[16,1024], index: 0, kind: input, shape index: {}]
  %s1 = inlined_call_operand.vmem [shape: f32[8,16], index: 1, kind: input, shape index: {}]
  %s2 = inlined_call_operand.vmem [shape: f32[8,1], index: 2, kind: input, shape index: {}]
  %s3 = inlined_call_operand.vmem [shape: f32[4,16,8], index: 3, kind: input, shape index: {}]
  %s4 = inlined_call_operand.vmem [shape: f32[16,1], index: 4, kind: input, shape index: {}]
  %s5 = inlined_call_operand.hbm [shape: f32[16,1024], index: 5, kind: output, shape index: {}]
  %s6 = sld [smem:[#allocation0]]
  $region57: #{tpu_custom_call.1} parent=0
    _
  %s8 = ssub.s32 1, %s6
  %s9 = scalar_select 0, %s8, %s6
  $region1: #{tpu_custom_call.1} parent=0
    #allocation2 [shape = 'u8[65536]{0}', space=vmem, size = 0x10000, scoped, tag = 'input window, operand 0']
    #allocation3 [shape = 's32[2]{0}', space=sflag, size = 0x8, scoped, tag = 'scoped memory for tpu_custom_call.1']
    #allocation4 [shape = 's32[2]{0}', space=sflag, size = 0x8, scoped, tag = 'scoped memory for tpu_custom_call.1']
    #allocation5 [shape = 'u8[65536]{0}', space=vmem, size = 0x10000, scoped, tag = 'output window, operand 0']
    %10 = vsyncpa [#allocation3], 0
    %s11 = scalar_lea.sflag [#allocation3], 1
    %12 = vsyncpa %s11, 0
    %13 = vsyncpa [#allocation4], 0
    %s14 = scalar_lea.sflag [#allocation4], 1
    %15 = vsyncpa %s14, 0
    loop: start=0, step=1, limit=4
    $region2: #{tpu_custom_call.1} parent=1 // loop_pre_header
      _
    $region3: #{tpu_custom_call.1} parent=1 // loop_header
      %s17 = sphi 0, %s21
      %p18 = scmp.ge.s32.totalorder %s17, 4
      %s27 = sphi 0, %s29
      %s30 = sphi 0, %s27
      %s31 = sphi 0, %s30
      %s47 = sphi 0, %s31
      %s51 = sphi 0, %s51
      %s53 = sphi 0, %s51
      %s54 = sphi 0, %s53
      %s68 = sphi 0, %s54
      %s72 = sphi 0, %s72
      %s74 = sphi 0, %s72
      %s75 = sphi 0, %s74
      %s89 = sphi 0, %s75
      %s93 = sphi 0, %s93
      %s95 = sphi 0, %s93
      %s96 = sphi 0, %s95
      %s110 = sphi 0, %s96
      %s114 = sphi 0, %s114
      %s116 = sphi 0, %s114
      %s117 = sphi 0, %s116
      %s131 = sphi 0, %s117
      %s137 = sphi 0, %s139
      %s140 = sphi 0, %s137
      %s141 = sphi 0, %s140
      %s157 = sphi 0, %s141
    $region4: #{tpu_custom_call.1} parent=1 // loop_header_branch
      %20 = sbr.rel (%p18) target = $region8
    $region5: #{tpu_custom_call.1} parent=1 // loop_body
      %s22 = ssub.s32 %s17, 1
      %s23 = ssub.s32 %s17, 2
      %s24 = sadd.s32 %s17, 1
      %s25 = ssub.s32 %s17, %s24
      %p26 = scmp.eq.s32.totalorder %s25, 0
      %s28 = sadd.s32 %s27, 1
      %s29 = scalar_select %p26, %s27, %s28
      %p32 = pneg %p26
      %p33 = scmp.eq.s32.totalorder %s17, 1
      %p34 = por %p32, %p33
      %p35 = scmp.ne.s32.totalorder %s27, %s30
      %p36 = scmp.eq.s32.totalorder %s17, 0
      %p37 = por %p35, %p36
      %p38 = scmp.ne.s32.totalorder %s27, %s30
      %p39 = scmp.eq.s32.totalorder %s22, 1
      %p40 = por %p38, %p39
      %p41 = scmp.ne.s32.totalorder %s30, %s31
      %p42 = scmp.eq.s32.totalorder %s22, 0
      %p43 = por %p41, %p42
      %p44 = scmp.ne.s32.totalorder %s30, %s31
      %p45 = scmp.eq.s32.totalorder %s23, 1
      %p46 = por %p44, %p45
      %p48 = scmp.ne.s32.totalorder %s31, %s47
      %p49 = scmp.eq.s32.totalorder %s23, 0
      %p50 = por %p48, %p49
      %s52 = sadd.s32 %s51, 1
      %p55 = scmp.eq.s32.totalorder %s17, 1
      %p56 = scmp.ne.s32.totalorder %s51, %s53
      %p57 = scmp.eq.s32.totalorder %s17, 0
      %p58 = por %p56, %p57
      %p59 = scmp.ne.s32.totalorder %s51, %s53
      %p60 = scmp.eq.s32.totalorder %s22, 1
      %p61 = por %p59, %p60
      %p62 = scmp.ne.s32.totalorder %s53, %s54
      %p63 = scmp.eq.s32.totalorder %s22, 0
      %p64 = por %p62, %p63
      %p65 = scmp.ne.s32.totalorder %s53, %s54
      %p66 = scmp.eq.s32.totalorder %s23, 1
      %p67 = por %p65, %p66
      %p69 = scmp.ne.s32.totalorder %s54, %s68
      %p70 = scmp.eq.s32.totalorder %s23, 0
      %p71 = por %p69, %p70
      %s73 = sadd.s32 %s72, 1
      %p76 = scmp.eq.s32.totalorder %s17, 1
      %p77 = scmp.ne.s32.totalorder %s72, %s74
      %p78 = scmp.eq.s32.totalorder %s17, 0
      %p79 = por %p77, %p78
      %p80 = scmp.ne.s32.totalorder %s72, %s74
      %p81 = scmp.eq.s32.totalorder %s22, 1
      %p82 = por %p80, %p81
      %p83 = scmp.ne.s32.totalorder %s74, %s75
      %p84 = scmp.eq.s32.totalorder %s22, 0
      %p85 = por %p83, %p84
      %p86 = scmp.ne.s32.totalorder %s74, %s75
      %p87 = scmp.eq.s32.totalorder %s23, 1
      %p88 = por %p86, %p87
      %p90 = scmp.ne.s32.totalorder %s75, %s89
      %p91 = scmp.eq.s32.totalorder %s23, 0
      %p92 = por %p90, %p91
      %s94 = sadd.s32 %s93, 1
      %p97 = scmp.eq.s32.totalorder %s17, 1
      %p98 = scmp.ne.s32.totalorder %s93, %s95
      %p99 = scmp.eq.s32.totalorder %s17, 0
      %p100 = por %p98, %p99
      %p101 = scmp.ne.s32.totalorder %s93, %s95
      %p102 = scmp.eq.s32.totalorder %s22, 1
      %p103 = por %p101, %p102
      %p104 = scmp.ne.s32.totalorder %s95, %s96
      %p105 = scmp.eq.s32.totalorder %s22, 0
      %p106 = por %p104, %p105
      %p107 = scmp.ne.s32.totalorder %s95, %s96
      %p108 = scmp.eq.s32.totalorder %s23, 1
      %p109 = por %p107, %p108
      %p111 = scmp.ne.s32.totalorder %s96, %s110
      %p112 = scmp.eq.s32.totalorder %s23, 0
      %p113 = por %p111, %p112
      %s115 = sadd.s32 %s114, 1
      %p118 = scmp.eq.s32.totalorder %s17, 1
      %p119 = scmp.ne.s32.totalorder %s114, %s116
      %p120 = scmp.eq.s32.totalorder %s17, 0
      %p121 = por %p119, %p120
      %p122 = scmp.ne.s32.totalorder %s114, %s116
      %p123 = scmp.eq.s32.totalorder %s22, 1
      %p124 = por %p122, %p123
      %p125 = scmp.ne.s32.totalorder %s116, %s117
      %p126 = scmp.eq.s32.totalorder %s22, 0
      %p127 = por %p125, %p126
      %p128 = scmp.ne.s32.totalorder %s116, %s117
      %p129 = scmp.eq.s32.totalorder %s23, 1
      %p130 = por %p128, %p129
      %p132 = scmp.ne.s32.totalorder %s117, %s131
      %p133 = scmp.eq.s32.totalorder %s23, 0
      %p134 = por %p132, %p133
      %s135 = ssub.s32 %s17, %s24
      %p136 = scmp.eq.s32.totalorder %s135, 0
      %s138 = sadd.s32 %s137, 1
      %s139 = scalar_select %p136, %s137, %s138
      %p142 = pneg %p136
      %p143 = scmp.eq.s32.totalorder %s17, 1
      %p144 = por %p142, %p143
      %p145 = scmp.ne.s32.totalorder %s137, %s140
      %p146 = scmp.eq.s32.totalorder %s17, 0
      %p147 = por %p145, %p146
      %p148 = scmp.ne.s32.totalorder %s137, %s140
      %p149 = scmp.eq.s32.totalorder %s22, 1
      %p150 = por %p148, %p149
      %p151 = scmp.ne.s32.totalorder %s140, %s141
      %p152 = scmp.eq.s32.totalorder %s22, 0
      %p153 = por %p151, %p152
      %p154 = scmp.ne.s32.totalorder %s140, %s141
      %p155 = scmp.eq.s32.totalorder %s23, 1
      %p156 = por %p154, %p155
      %p158 = scmp.ne.s32.totalorder %s141, %s157
      %p159 = scmp.eq.s32.totalorder %s23, 0
      %p160 = por %p158, %p159
      %p161 = scmp.le.s32.totalorder 1, %s17
      %p162 = scmp.lt.s32.totalorder %s17, 3
      %p163 = pnand %p161, %p162
      %p164 = pneg %p163
      // Predicated region
      $region9: #{tpu_custom_call.1} parent=5 // pred_check
        _
      $region10: #{tpu_custom_call.1} parent=5 // pred_check_branch
        %166 = sbr.rel (%p163) target = $region12
      $region11: #{tpu_custom_call.1} parent=5 // pred_region
        %s167 = ssub.s32 %s17, 1
        // Predicated region
        $region13: #{tpu_custom_call.1} parent=11 // pred_check
          %p168 = pneg %p64
        $region14: #{tpu_custom_call.1} parent=11 // pred_check_branch
          %170 = sbr.rel (%p168) target = $region16
        $region15: #{tpu_custom_call.1} parent=11 // pred_region
          _
        $region16: #{tpu_custom_call.1} parent=11 // pred_fallthru
          _
        // Predicated region
        $region17: #{tpu_custom_call.1} parent=11 // pred_check
          %p171 = pneg %p85
        $region18: #{tpu_custom_call.1} parent=11 // pred_check_branch
          %173 = sbr.rel (%p171) target = $region20
        $region19: #{tpu_custom_call.1} parent=11 // pred_region
          _
        $region20: #{tpu_custom_call.1} parent=11 // pred_fallthru
          _
        // Predicated region
        $region21: #{tpu_custom_call.1} parent=11 // pred_check
          %p174 = pneg %p106
        $region22: #{tpu_custom_call.1} parent=11 // pred_check_branch
          %176 = sbr.rel (%p174) target = $region24
        $region23: #{tpu_custom_call.1} parent=11 // pred_region
          _
        $region24: #{tpu_custom_call.1} parent=11 // pred_fallthru
          _
        // Predicated region
        $region25: #{tpu_custom_call.1} parent=11 // pred_check
          %p177 = pneg %p127
        $region26: #{tpu_custom_call.1} parent=11 // pred_check_branch
          %179 = sbr.rel (%p177) target = $region28
        $region27: #{tpu_custom_call.1} parent=11 // pred_region
          _
        $region28: #{tpu_custom_call.1} parent=11 // pred_fallthru
          _
      $region12: #{tpu_custom_call.1} parent=5 // pred_fallthru
        _
      %p180 = scmp.lt.s32.totalorder %s17, 2
      // Predicated region
      $region29: #{tpu_custom_call.1} parent=5 // pred_check
        %p181 = pneg %p180
      $region30: #{tpu_custom_call.1} parent=5 // pred_check_branch
        %183 = sbr.rel (%p181) target = $region32
      $region31: #{tpu_custom_call.1} parent=5 // pred_region
        // Predicated region
        $region33: #{tpu_custom_call.1} parent=31 // pred_check
          %p184 = pneg %p37
        $region34: #{tpu_custom_call.1} parent=31 // pred_check_branch
          %186 = sbr.rel (%p184) target = $region36
        $region35: #{tpu_custom_call.1} parent=31 // pred_region
          %s187 = sand.u32 %s27, 1
          %s188 = scalar_lea.sflag [#allocation3], %s187
          %s189 = sand.u32 %s27, 1
          %s190 = smul.addr %s189, 64
          %s191 = scalar_lea.vmem [#allocation2], %s190
          %s192 = smul.u32 4, %s17
          %s194 = ssub.s32 1024, 1024
          %195 = vsyncadd %s188, %s194
          %s196 = smul.addr %s192, 128
          %s197 = scalar_lea.hbm %s0, %s196
          %s198 = sshll.u32 %s191, 4
          %s199 = int_to_ptr.vmem [resolvable:$true] %s198
          %204 = dma.hbm_to_vmem [thread:$0]  %s197, 1024, %s199, %s188, 1024, 512, 32
        $region36: #{tpu_custom_call.1} parent=31 // pred_fallthru
          _
      $region32: #{tpu_custom_call.1} parent=5 // pred_fallthru
        _
      %p205 = scmp.le.s32.totalorder 1, %s17
      %p206 = scmp.lt.s32.totalorder %s17, 3
      %p207 = pnand %p205, %p206
      %p208 = pneg %p207
      // Predicated region
      $region37: #{tpu_custom_call.1} parent=5 // pred_check
        _
      $region38: #{tpu_custom_call.1} parent=5 // pred_check_branch
        %210 = sbr.rel (%p207) target = $region40
      $region39: #{tpu_custom_call.1} parent=5 // pred_region
        %s211 = ssub.s32 %s17, 1
        %s212 = sand.u32 %s30, 1
        %s213 = scalar_lea.sflag [#allocation3], %s212
        %s214 = sand.u32 %s30, 1
        %s215 = smul.addr %s214, 64
        %s216 = scalar_lea.vmem [#allocation2], %s215
        // Predicated region
        $region41: #{tpu_custom_call.1} parent=39 // pred_check
          %p217 = pneg %p43
        $region42: #{tpu_custom_call.1} parent=39 // pred_check_branch
          %219 = sbr.rel (%p217) target = $region44
        $region43: #{tpu_custom_call.1} parent=39 // pred_region
          %220 = dma.done %s213, 1024
        $region44: #{tpu_custom_call.1} parent=39 // pred_fallthru
          _
        %s221 = sand.u32 %s30, 1
        %s222 = scalar_lea.sflag [#allocation3], %s221
        %s223 = sand.u32 %s30, 1
        %s224 = smul.addr %s223, 64
        %s225 = scalar_lea.vmem [#allocation2], %s224
        %p226 = pneg %p43
        %p227 = pneg %p40
        %p228 = pneg %p64
        %p229 = pneg %p61
        %p230 = pneg %p85
        %p231 = pneg %p82
        %p232 = pneg %p106
        %p233 = pneg %p103
        %p234 = pneg %p127
        %p235 = pneg %p124
        %p236 = pneg %p153
        %p237 = pneg %p150
        %s238 = sand.u32 %s140, 1
        %s239 = scalar_lea.sflag [#allocation4], %s238
        %s240 = sand.u32 %s140, 1
        %s241 = smul.addr %s240, 64
        %s242 = scalar_lea.vmem [#allocation5], %s241
        %s243 = smul.u32 4, %s22
        %s244 = smul.u32 4, %s22
        %v245 = vld [vmem:[%s216] sm:$0xff]
        %v246 = vld [vmem:[%s216 + $0x8] sm:$0xff]
        %v247 = vld [vmem:[%s216 + $0x10] sm:$0xff]
        %v248 = vld [vmem:[%s216 + $0x18] sm:$0xff]
        %v249 = vld [vmem:[%s216 + $0x20] sm:$0xff]
        %v250 = vld [vmem:[%s216 + $0x28] sm:$0xff]
        %v251 = vld [vmem:[%s216 + $0x30] sm:$0xff]
        %v252 = vld [vmem:[%s216 + $0x38] sm:$0xff]
        %v253 = vld [vmem:[%s1] sm:$0xff]
        %v254 = vld [vmem:[%s2] sm:$0xff]
        %256 = vset.pattern.permute.xlu0 0
        %257 = vperm.xlu0 %256, %v254
        %v258 = vpop.permute.xlu0 %257
        %vm260 = vcmask 130048
        %v262 = vsel %vm260, %v253, 0
        %264 = vmatprep.subr.mxu0 %v246
        %265 = vmatpush1.msra.mxu0 %v245
        %266 = vmatprep.subr.mxu0 %v250
        %267 = vmatpush1.msra.mxu0 %v249
        %268 = vmatprep.subr.mxu0 0.0
        %269 = vmatpush1.msra.mxu0 0.0
        %270 = vmatprep.subr.mxu0 0.0
        %271 = vmatpush1.msra.mxu0 0.0
        %272 = vmatprep.subr.mxu0 0.0
        %273 = vmatpush1.msra.mxu0 0.0
        %274 = vmatprep.subr.mxu0 0.0
        %275 = vmatpush1.msra.mxu0 0.0
        %276 = vmatprep.subr.mxu0 0.0
        %277 = vmatpush1.msra.mxu0 0.0
        %278 = vmatprep.subr.mxu0 0.0
        %279 = vmatpush1.msra.mxu0 0.0
        %280 = vmatprep.subr.mxu0 0.0
        %281 = vmatpush1.msra.mxu0 0.0
        %282 = vmatprep.subr.mxu0 0.0
        %283 = vmatpush1.msra.mxu0 0.0
        %284 = vmatprep.subr.mxu0 0.0
        %285 = vmatpush1.msra.mxu0 0.0
        %286 = vmatprep.subr.mxu0 0.0
        %287 = vmatpush1.msra.mxu0 0.0
        %288 = vmatprep.subr.mxu0 0.0
        %289 = vmatpush1.msra.mxu0 0.0
        %290 = vmatprep.subr.mxu0 0.0
        %291 = vmatpush1.msra.mxu0 0.0
        %292 = vmatprep.subr.mxu0 0.0
        %293 = vmatpush1.msra.mxu0 0.0
        %294 = vmatprep.subr.mxu0 0.0
        %295 = vmatpush1.msra.mxu0 0.0
        %296 = vmatprep.subr.mxu0 0.0
        %297 = vmatpush1.msra.mxu0 0.0
        %298 = vmatprep.subr.mxu0 0.0
        %299 = vmatpush1.msra.mxu0 0.0
        %300 = vmatprep.subr.mxu0 0.0
        %301 = vmatpush1.msra.mxu0 0.0
        %302 = vmatprep.subr.mxu0 0.0
        %303 = vmatpush1.msra.mxu0 0.0
        %304 = vmatprep.subr.mxu0 0.0
        %305 = vmatpush1.msra.mxu0 0.0
        %306 = vmatprep.subr.mxu0 0.0
        %307 = vmatpush1.msra.mxu0 0.0
        %308 = vmatprep.subr.mxu0 0.0
        %309 = vmatpush1.msra.mxu0 0.0
        %310 = vmatprep.subr.mxu0 0.0
        %311 = vmatpush1.msra.mxu0 0.0
        %312 = vmatprep.subr.mxu0 0.0
        %313 = vmatpush1.msra.mxu0 0.0
        %314 = vmatprep.subr.mxu0 0.0
        %315 = vmatpush1.msra.mxu0 0.0
        %316 = vmatprep.subr.mxu0 0.0
        %317 = vmatpush1.msra.mxu0 0.0
        %318 = vmatprep.subr.mxu0 0.0
        %319 = vmatpush1.msra.mxu0 0.0
        %320 = vmatprep.subr.mxu0 0.0
        %321 = vmatpush1.msra.mxu0 0.0
        %322 = vmatprep.subr.mxu0 0.0
        %323 = vmatpush1.msra.mxu0 0.0
        %324 = vmatprep.subr.mxu0 0.0
        %325 = vmatpush1.msra.mxu0 0.0
        %326 = vmatprep.subr.mxu0 0.0
        %327 = vmatpush1.msra.mxu0 0.0
        %328 = vmatprep.mubr.f32.mxu0 0.0
        %329 = vmatmul.mubr.f32.gmra.mrb[0].mxu0 %v262
        %v330 = vpop.f32.mrb[0].mxu0
        %v331 = vadd.f32 %v258, %v330
        %v332 = vpop.f32.mrb[0].mxu0
        %v333 = vadd.f32 %v258, %v332
        %334 = vdwg.mxu0
        %335 = vmatprep.subr.mxu0 %v248
        %336 = vmatpush1.msra.mxu0 %v247
        %337 = vmatprep.subr.mxu0 %v252
        %338 = vmatpush1.msra.mxu0 %v251
        %339 = vmatprep.subr.mxu0 0.0
        %340 = vmatpush1.msra.mxu0 0.0
        %341 = vmatprep.subr.mxu0 0.0
        %342 = vmatpush1.msra.mxu0 0.0
        %343 = vmatprep.subr.mxu0 0.0
        %344 = vmatpush1.msra.mxu0 0.0
        %345 = vmatprep.subr.mxu0 0.0
        %346 = vmatpush1.msra.mxu0 0.0
        %347 = vmatprep.subr.mxu0 0.0
        %348 = vmatpush1.msra.mxu0 0.0
        %349 = vmatprep.subr.mxu0 0.0
        %350 = vmatpush1.msra.mxu0 0.0
        %351 = vmatprep.subr.mxu0 0.0
        %352 = vmatpush1.msra.mxu0 0.0
        %353 = vmatprep.subr.mxu0 0.0
        %354 = vmatpush1.msra.mxu0 0.0
        %355 = vmatprep.subr.mxu0 0.0
        %356 = vmatpush1.msra.mxu0 0.0
        %357 = vmatprep.subr.mxu0 0.0
        %358 = vmatpush1.msra.mxu0 0.0
        %359 = vmatprep.subr.mxu0 0.0
        %360 = vmatpush1.msra.mxu0 0.0
        %361 = vmatprep.subr.mxu0 0.0
        %362 = vmatpush1.msra.mxu0 0.0
        %363 = vmatprep.subr.mxu0 0.0
        %364 = vmatpush1.msra.mxu0 0.0
        %365 = vmatprep.subr.mxu0 0.0
        %366 = vmatpush1.msra.mxu0 0.0
        %367 = vmatprep.subr.mxu0 0.0
        %368 = vmatpush1.msra.mxu0 0.0
        %369 = vmatprep.subr.mxu0 0.0
        %370 = vmatpush1.msra.mxu0 0.0
        %371 = vmatprep.subr.mxu0 0.0
        %372 = vmatpush1.msra.mxu0 0.0
        %373 = vmatprep.subr.mxu0 0.0
        %374 = vmatpush1.msra.mxu0 0.0
        %375 = vmatprep.subr.mxu0 0.0
        %376 = vmatpush1.msra.mxu0 0.0
        %377 = vmatprep.subr.mxu0 0.0
        %378 = vmatpush1.msra.mxu0 0.0
        %379 = vmatprep.subr.mxu0 0.0
        %380 = vmatpush1.msra.mxu0 0.0
        %381 = vmatprep.subr.mxu0 0.0
        %382 = vmatpush1.msra.mxu0 0.0
        %383 = vmatprep.subr.mxu0 0.0
        %384 = vmatpush1.msra.mxu0 0.0
        %385 = vmatprep.subr.mxu0 0.0
        %386 = vmatpush1.msra.mxu0 0.0
        %387 = vmatprep.subr.mxu0 0.0
        %388 = vmatpush1.msra.mxu0 0.0
        %389 = vmatprep.subr.mxu0 0.0
        %390 = vmatpush1.msra.mxu0 0.0
        %391 = vmatprep.subr.mxu0 0.0
        %392 = vmatpush1.msra.mxu0 0.0
        %393 = vmatprep.subr.mxu0 0.0
        %394 = vmatpush1.msra.mxu0 0.0
        %395 = vmatprep.subr.mxu0 0.0
        %396 = vmatpush1.msra.mxu0 0.0
        %397 = vmatprep.subr.mxu0 0.0
        %398 = vmatpush1.msra.mxu0 0.0
        %399 = vmatprep.mubr.f32.mxu0 0.0
        %400 = vmatmul.mubr.f32.gmra.mrb[0].mxu0 %v262
        %v401 = vpop.f32.mrb[0].mxu0
        %v402 = vadd.f32 %v258, %v401
        %v403 = vpop.f32.mrb[0].mxu0
        %v404 = vadd.f32 %v258, %v403
        %405 = vdwg.mxu0
        %v406 = vxor.u32 %v331, 2147483648
        %v407 = vxor.u32 %v333, 2147483648
        %v408 = vxor.u32 %v402, 2147483648
        %v409 = vxor.u32 %v404, 2147483648
        %v410 = vmul.f32 %v406, 1.442695
        %v411 = vpow.pop %v410
        %v412 = vmul.f32 %v407, 1.442695
        %v413 = vpow.pop %v412
        %v414 = vmul.f32 %v408, 1.442695
        %v415 = vpow.pop %v414
        %v416 = vmul.f32 %v409, 1.442695
        %v417 = vpow.pop %v416
        %v418 = vadd.f32 %v411, 1.0
        %v419 = vadd.f32 %v413, 1.0
        %v420 = vadd.f32 %v415, 1.0
        %v421 = vadd.f32 %v417, 1.0
        %v422 = vrcp.pop %v418
        %v423 = vmul.f32 1.0, %v422
        %v424 = vrcp.pop %v419
        %v425 = vmul.f32 1.0, %v424
        %v426 = vrcp.pop %v420
        %v427 = vmul.f32 1.0, %v426
        %v428 = vrcp.pop %v421
        %v429 = vmul.f32 1.0, %v428
        %v430 = vmul.f32 %v331, %v423
        %v431 = vmul.f32 %v333, %v425
        %v432 = vmul.f32 %v402, %v427
        %v433 = vmul.f32 %v404, %v429
        %v434 = vlaneseq
        %v435 = vand.u32 %v434, 127
        %v436 = vadd.s32 %v435, 128
        %v437 = vadd.s32 %v435, 256
        %v438 = vadd.s32 %v435, 384
        %v439 = vand.u32 %v435, 255
        %v440 = vand.u32 %v436, 255
        %v441 = vand.u32 %v437, 255
        %v442 = vand.u32 %v438, 255
        %v443 = vand.u32 %v439, 15
        %v444 = vand.u32 %v440, 15
        %v445 = vand.u32 %v441, 15
        %v446 = vand.u32 %v442, 15
        %v447 = vshra.s32 %v439, 4
        %v448 = vshra.s32 %v440, 4
        %v449 = vshra.s32 %v441, 4
        %v450 = vshra.s32 %v442, 4
        %v451 = vadd.s32 %v443, 4294967294
        %v452 = vadd.s32 %v444, 4294967294
        %v453 = vadd.s32 %v445, 4294967294
        %v454 = vadd.s32 %v446, 4294967294
        %vm455 = vcmp.ge.s32.totalorder %v451, 0
        %vm456 = vcmp.ge.s32.totalorder %v452, 0
        %vm457 = vcmp.ge.s32.totalorder %v453, 0
        %vm458 = vcmp.ge.s32.totalorder %v454, 0
        %vm459 = vcmp.lt.s32.totalorder %v451, 16
        %vm460 = vcmp.lt.s32.totalorder %v452, 16
        %vm461 = vcmp.lt.s32.totalorder %v453, 16
        %vm462 = vcmp.lt.s32.totalorder %v454, 16
        %vm463 = vmand %vm455, %vm459
        %vm464 = vmand %vm456, %vm460
        %vm465 = vmand %vm457, %vm461
        %vm466 = vmand %vm458, %vm462
        %v467 = vadd.s32 %v443, 4294967295
        %v468 = vadd.s32 %v444, 4294967295
        %v469 = vadd.s32 %v445, 4294967295
        %v470 = vadd.s32 %v446, 4294967295
        %vm471 = vcmp.ge.s32.totalorder %v467, 0
        %vm472 = vcmp.ge.s32.totalorder %v468, 0
        %vm473 = vcmp.ge.s32.totalorder %v469, 0
        %vm474 = vcmp.ge.s32.totalorder %v470, 0
        %vm475 = vcmp.lt.s32.totalorder %v467, 16
        %vm476 = vcmp.lt.s32.totalorder %v468, 16
        %vm477 = vcmp.lt.s32.totalorder %v469, 16
        %vm478 = vcmp.lt.s32.totalorder %v470, 16
        %vm479 = vmand %vm471, %vm475
        %vm480 = vmand %vm472, %vm476
        %vm481 = vmand %vm473, %vm477
        %vm482 = vmand %vm474, %vm478
        %v483 = vadd.s32 %v443, 1
        %v484 = vadd.s32 %v444, 1
        %v485 = vadd.s32 %v445, 1
        %v486 = vadd.s32 %v446, 1
        %vm487 = vcmp.ge.s32.totalorder %v483, 0
        %vm488 = vcmp.ge.s32.totalorder %v484, 0
        %vm489 = vcmp.ge.s32.totalorder %v485, 0
        %vm490 = vcmp.ge.s32.totalorder %v486, 0
        %vm491 = vcmp.lt.s32.totalorder %v483, 16
        %vm492 = vcmp.lt.s32.totalorder %v484, 16
        %vm493 = vcmp.lt.s32.totalorder %v485, 16
        %vm494 = vcmp.lt.s32.totalorder %v486, 16
        %vm495 = vmand %vm487, %vm491
        %vm496 = vmand %vm488, %vm492
        %vm497 = vmand %vm489, %vm493
        %vm498 = vmand %vm490, %vm494
        %v499 = vadd.s32 %v443, 2
        %v500 = vadd.s32 %v444, 2
        %v501 = vadd.s32 %v445, 2
        %v502 = vadd.s32 %v446, 2
        %vm503 = vcmp.ge.s32.totalorder %v499, 0
        %vm504 = vcmp.ge.s32.totalorder %v500, 0
        %vm505 = vcmp.ge.s32.totalorder %v501, 0
        %vm506 = vcmp.ge.s32.totalorder %v502, 0
        %vm507 = vcmp.lt.s32.totalorder %v499, 16
        %vm508 = vcmp.lt.s32.totalorder %v500, 16
        %vm509 = vcmp.lt.s32.totalorder %v501, 16
        %vm510 = vcmp.lt.s32.totalorder %v502, 16
        %vm511 = vmand %vm503, %vm507
        %vm512 = vmand %vm504, %vm508
        %vm513 = vmand %vm505, %vm509
        %vm514 = vmand %vm506, %vm510
        %v515 = vadd.s32 %v447, 4294967294
        %v516 = vadd.s32 %v448, 4294967294
        %v517 = vadd.s32 %v449, 4294967294
        %v518 = vadd.s32 %v450, 4294967294
        %vm519 = vcmp.ge.s32.totalorder %v515, 0
        %vm520 = vcmp.ge.s32.totalorder %v516, 0
        %vm521 = vcmp.ge.s32.totalorder %v517, 0
        %vm522 = vcmp.ge.s32.totalorder %v518, 0
        %vm523 = vcmp.lt.s32.totalorder %v515, 16
        %vm524 = vcmp.lt.s32.totalorder %v516, 16
        %vm525 = vcmp.lt.s32.totalorder %v517, 16
        %vm526 = vcmp.lt.s32.totalorder %v518, 16
        %vm527 = vmand %vm519, %vm523
        %vm528 = vmand %vm520, %vm524
        %vm529 = vmand %vm521, %vm525
        %vm530 = vmand %vm522, %vm526
        %v531 = vadd.s32 %v447, 4294967295
        %v532 = vadd.s32 %v448, 4294967295
        %v533 = vadd.s32 %v449, 4294967295
        %v534 = vadd.s32 %v450, 4294967295
        %vm535 = vcmp.ge.s32.totalorder %v531, 0
        %vm536 = vcmp.ge.s32.totalorder %v532, 0
        %vm537 = vcmp.ge.s32.totalorder %v533, 0
        %vm538 = vcmp.ge.s32.totalorder %v534, 0
        %vm539 = vcmp.lt.s32.totalorder %v531, 16
        %vm540 = vcmp.lt.s32.totalorder %v532, 16
        %vm541 = vcmp.lt.s32.totalorder %v533, 16
        %vm542 = vcmp.lt.s32.totalorder %v534, 16
        %vm543 = vmand %vm535, %vm539
        %vm544 = vmand %vm536, %vm540
        %vm545 = vmand %vm537, %vm541
        %vm546 = vmand %vm538, %vm542
        %v547 = vadd.s32 %v447, 1
        %v548 = vadd.s32 %v448, 1
        %v549 = vadd.s32 %v449, 1
        %v550 = vadd.s32 %v450, 1
        %vm551 = vcmp.ge.s32.totalorder %v547, 0
        %vm552 = vcmp.ge.s32.totalorder %v548, 0
        %vm553 = vcmp.ge.s32.totalorder %v549, 0
        %vm554 = vcmp.ge.s32.totalorder %v550, 0
        %vm555 = vcmp.lt.s32.totalorder %v547, 16
        %vm556 = vcmp.lt.s32.totalorder %v548, 16
        %vm557 = vcmp.lt.s32.totalorder %v549, 16
        %vm558 = vcmp.lt.s32.totalorder %v550, 16
        %vm559 = vmand %vm551, %vm555
        %vm560 = vmand %vm552, %vm556
        %vm561 = vmand %vm553, %vm557
        %vm562 = vmand %vm554, %vm558
        %v563 = vadd.s32 %v447, 2
        %v564 = vadd.s32 %v448, 2
        %v565 = vadd.s32 %v449, 2
        %v566 = vadd.s32 %v450, 2
        %vm567 = vcmp.ge.s32.totalorder %v563, 0
        %vm568 = vcmp.ge.s32.totalorder %v564, 0
        %vm569 = vcmp.ge.s32.totalorder %v565, 0
        %vm570 = vcmp.ge.s32.totalorder %v566, 0
        %vm571 = vcmp.lt.s32.totalorder %v563, 16
        %vm572 = vcmp.lt.s32.totalorder %v564, 16
        %vm573 = vcmp.lt.s32.totalorder %v565, 16
        %vm574 = vcmp.lt.s32.totalorder %v566, 16
        %vm575 = vmand %vm567, %vm571
        %vm576 = vmand %vm568, %vm572
        %vm577 = vmand %vm569, %vm573
        %vm578 = vmand %vm570, %vm574
        %v579 = vld [vmem:[%s3] sm:$0xff]
        %v580 = vld [vmem:[%s3 + $0x8] sm:$0xff]
        %581 = vrot.lane.b32.xlu0 %v430, 2
        %v582 = vpop.permute.xlu0 %581
        %583 = vrot.lane.b32.xlu0 %v431, 2
        %v584 = vpop.permute.xlu0 %583
        %585 = vrot.lane.b32.xlu0 %v432, 2
        %v586 = vpop.permute.xlu0 %585
        %587 = vrot.lane.b32.xlu0 %v433, 2
        %v588 = vpop.permute.xlu0 %587
        %vm589 = vcmp.lt.s32.totalorder %v435, 2
        %v590 = vsel %vm589, %v586, %v588
        %v591 = vsel %vm589, %v584, %v586
        %v592 = vsel %vm589, %v582, %v584
        %v593 = vsel %vm589, %v588, %v582
        %v594 = vsel %vm463, %v593, -3e+38
        %v595 = vsel %vm464, %v592, -3e+38
        %v596 = vsel %vm465, %v591, -3e+38
        %v597 = vsel %vm466, %v590, -3e+38
        %v598 = vmax.f32 %v430, %v594
        %v599 = vmax.f32 %v431, %v595
        %v600 = vmax.f32 %v432, %v596
        %v601 = vmax.f32 %v433, %v597
        %602 = vrot.lane.b32.xlu0 %v430, 1
        %v603 = vpop.permute.xlu0 %602
        %604 = vrot.lane.b32.xlu0 %v431, 1
        %v605 = vpop.permute.xlu0 %604
        %606 = vrot.lane.b32.xlu0 %v432, 1
        %v607 = vpop.permute.xlu0 %606
        %608 = vrot.lane.b32.xlu0 %v433, 1
        %v609 = vpop.permute.xlu0 %608
        %vm610 = vcmp.lt.s32.totalorder %v435, 1
        %v611 = vsel %vm610, %v607, %v609
        %v612 = vsel %vm610, %v605, %v607
        %v613 = vsel %vm610, %v603, %v605
        %v614 = vsel %vm610, %v609, %v603
        %v615 = vsel %vm479, %v614, -3e+38
        %v616 = vsel %vm480, %v613, -3e+38
        %v617 = vsel %vm481, %v612, -3e+38
        %v618 = vsel %vm482, %v611, -3e+38
        %v619 = vmax.f32 %v598, %v615
        %v620 = vmax.f32 %v599, %v616
        %v621 = vmax.f32 %v600, %v617
        %v622 = vmax.f32 %v601, %v618
        %623 = vrot.lane.b32.xlu0 %v430, 127
        %v624 = vpop.permute.xlu0 %623
        %625 = vrot.lane.b32.xlu0 %v431, 127
        %v626 = vpop.permute.xlu0 %625
        %627 = vrot.lane.b32.xlu0 %v432, 127
        %v628 = vpop.permute.xlu0 %627
        %629 = vrot.lane.b32.xlu0 %v433, 127
        %v630 = vpop.permute.xlu0 %629
        %vm631 = vcmp.lt.s32.totalorder %v435, 127
        %v632 = vsel %vm631, %v628, %v630
        %v633 = vsel %vm631, %v626, %v628
        %v634 = vsel %vm631, %v624, %v626
        %v635 = vsel %vm631, %v630, %v624
        %v636 = vsel %vm495, %v634, -3e+38
        %v637 = vsel %vm496, %v633, -3e+38
        %v638 = vsel %vm497, %v632, -3e+38
        %v639 = vsel %vm498, %v635, -3e+38
        %v640 = vmax.f32 %v619, %v636
        %v641 = vmax.f32 %v620, %v637
        %v642 = vmax.f32 %v621, %v638
        %v643 = vmax.f32 %v622, %v639
        %644 = vrot.lane.b32.xlu0 %v430, 126
        %v645 = vpop.permute.xlu0 %644
        %646 = vrot.lane.b32.xlu0 %v431, 126
        %v647 = vpop.permute.xlu0 %646
        %648 = vrot.lane.b32.xlu0 %v432, 126
        %v649 = vpop.permute.xlu0 %648
        %650 = vrot.lane.b32.xlu0 %v433, 126
        %v651 = vpop.permute.xlu0 %650
        %vm652 = vcmp.lt.s32.totalorder %v435, 126
        %v653 = vsel %vm652, %v649, %v651
        %v654 = vsel %vm652, %v647, %v649
        %v655 = vsel %vm652, %v645, %v647
        %v656 = vsel %vm652, %v651, %v645
        %v657 = vsel %vm511, %v655, -3e+38
        %v658 = vsel %vm512, %v654, -3e+38
        %v659 = vsel %vm513, %v653, -3e+38
        %v660 = vsel %vm514, %v656, -3e+38
        %v661 = vmax.f32 %v640, %v657
        %v662 = vmax.f32 %v641, %v658
        %v663 = vmax.f32 %v642, %v659
        %v664 = vmax.f32 %v643, %v660
        %665 = vrot.lane.b32.xlu0 %v661, 32
        %v666 = vpop.permute.xlu0 %665
        %667 = vrot.lane.b32.xlu0 %v662, 32
        %v668 = vpop.permute.xlu0 %667
        %669 = vrot.lane.b32.xlu0 %v663, 32
        %v670 = vpop.permute.xlu0 %669
        %671 = vrot.lane.b32.xlu0 %v664, 32
        %v672 = vpop.permute.xlu0 %671
        %vm673 = vcmp.lt.s32.totalorder %v435, 32
        %v674 = vsel %vm673, %v670, %v672
        %v675 = vsel %vm673, %v668, %v670
        %v676 = vsel %vm673, %v666, %v668
        %v677 = vsel %vm673, %v672, %v666
        %v678 = vsel %vm527, %v677, -3e+38
        %v679 = vsel %vm528, %v676, -3e+38
        %v680 = vsel %vm529, %v675, -3e+38
        %v681 = vsel %vm530, %v674, -3e+38
        %v682 = vmax.f32 %v661, %v678
        %v683 = vmax.f32 %v662, %v679
        %v684 = vmax.f32 %v663, %v680
        %v685 = vmax.f32 %v664, %v681
        %686 = vrot.lane.b32.xlu0 %v661, 16
        %v687 = vpop.permute.xlu0 %686
        %688 = vrot.lane.b32.xlu0 %v662, 16
        %v689 = vpop.permute.xlu0 %688
        %690 = vrot.lane.b32.xlu0 %v663, 16
        %v691 = vpop.permute.xlu0 %690
        %692 = vrot.lane.b32.xlu0 %v664, 16
        %v693 = vpop.permute.xlu0 %692
        %vm694 = vcmp.lt.s32.totalorder %v435, 16
        %v695 = vsel %vm694, %v691, %v693
        %v696 = vsel %vm694, %v689, %v691
        %v697 = vsel %vm694, %v687, %v689
        %v698 = vsel %vm694, %v693, %v687
        %v699 = vsel %vm543, %v698, -3e+38
        %v700 = vsel %vm544, %v697, -3e+38
        %v701 = vsel %vm545, %v696, -3e+38
        %v702 = vsel %vm546, %v695, -3e+38
        %v703 = vmax.f32 %v682, %v699
        %v704 = vmax.f32 %v683, %v700
        %v705 = vmax.f32 %v684, %v701
        %v706 = vmax.f32 %v685, %v702
        %707 = vrot.lane.b32.xlu0 %v661, 112
        %v708 = vpop.permute.xlu0 %707
        %709 = vrot.lane.b32.xlu0 %v662, 112
        %v710 = vpop.permute.xlu0 %709
        %711 = vrot.lane.b32.xlu0 %v663, 112
        %v712 = vpop.permute.xlu0 %711
        %713 = vrot.lane.b32.xlu0 %v664, 112
        %v714 = vpop.permute.xlu0 %713
        %vm715 = vcmp.lt.s32.totalorder %v435, 112
        %v716 = vsel %vm715, %v712, %v714
        %v717 = vsel %vm715, %v710, %v712
        %v718 = vsel %vm715, %v708, %v710
        %v719 = vsel %vm715, %v714, %v708
        %v720 = vsel %vm559, %v718, -3e+38
        %v721 = vsel %vm560, %v717, -3e+38
        %v722 = vsel %vm561, %v716, -3e+38
        %v723 = vsel %vm562, %v719, -3e+38
        %v724 = vmax.f32 %v703, %v720
        %v725 = vmax.f32 %v704, %v721
        %v726 = vmax.f32 %v705, %v722
        %v727 = vmax.f32 %v706, %v723
        %728 = vrot.lane.b32.xlu0 %v661, 96
        %v729 = vpop.permute.xlu0 %728
        %730 = vrot.lane.b32.xlu0 %v662, 96
        %v731 = vpop.permute.xlu0 %730
        %732 = vrot.lane.b32.xlu0 %v663, 96
        %v733 = vpop.permute.xlu0 %732
        %734 = vrot.lane.b32.xlu0 %v664, 96
        %v735 = vpop.permute.xlu0 %734
        %vm736 = vcmp.lt.s32.totalorder %v435, 96
        %v737 = vsel %vm736, %v733, %v735
        %v738 = vsel %vm736, %v731, %v733
        %v739 = vsel %vm736, %v729, %v731
        %v740 = vsel %vm736, %v735, %v729
        %v741 = vsel %vm575, %v739, -3e+38
        %v742 = vsel %vm576, %v738, -3e+38
        %v743 = vsel %vm577, %v737, -3e+38
        %v744 = vsel %vm578, %v740, -3e+38
        %v745 = vmax.f32 %v724, %v741
        %v746 = vmax.f32 %v725, %v742
        %v747 = vmax.f32 %v726, %v743
        %v748 = vmax.f32 %v727, %v744
        %s749 = scalar_lea.vmem %s3, 16
        %v750 = vld [vmem:[%s749] sm:$0xff]
        %v751 = vld [vmem:[%s749 + $0x8] sm:$0xff]
        %vm752 = vcmask 64512
        %v754 = vsel %vm752, %v750, 0
        %v757 = vsel %vm752, %v751, 0
        %759 = vmatprep.subr.mxu0 %v746
        %760 = vmatpush1.msra.mxu0 %v745
        %761 = vmatprep.subr.mxu0 0.0
        %762 = vmatpush1.msra.mxu0 0.0
        %763 = vmatprep.subr.mxu0 0.0
        %764 = vmatpush1.msra.mxu0 0.0
        %765 = vmatprep.subr.mxu0 0.0
        %766 = vmatpush1.msra.mxu0 0.0
        %767 = vmatprep.subr.mxu0 0.0
        %768 = vmatpush1.msra.mxu0 0.0
        %769 = vmatprep.subr.mxu0 0.0
        %770 = vmatpush1.msra.mxu0 0.0
        %771 = vmatprep.subr.mxu0 0.0
        %772 = vmatpush1.msra.mxu0 0.0
        %773 = vmatprep.subr.mxu0 0.0
        %774 = vmatpush1.msra.mxu0 0.0
        %775 = vmatprep.subr.mxu0 0.0
        %776 = vmatpush1.msra.mxu0 0.0
        %777 = vmatprep.subr.mxu0 0.0
        %778 = vmatpush1.msra.mxu0 0.0
        %779 = vmatprep.subr.mxu0 0.0
        %780 = vmatpush1.msra.mxu0 0.0
        %781 = vmatprep.subr.mxu0 0.0
        %782 = vmatpush1.msra.mxu0 0.0
        %783 = vmatprep.subr.mxu0 0.0
        %784 = vmatpush1.msra.mxu0 0.0
        %785 = vmatprep.subr.mxu0 0.0
        %786 = vmatpush1.msra.mxu0 0.0
        %787 = vmatprep.subr.mxu0 0.0
        %788 = vmatpush1.msra.mxu0 0.0
        %789 = vmatprep.subr.mxu0 0.0
        %790 = vmatpush1.msra.mxu0 0.0
        %791 = vmatprep.subr.mxu0 0.0
        %792 = vmatpush1.msra.mxu0 0.0
        %793 = vmatprep.subr.mxu0 0.0
        %794 = vmatpush1.msra.mxu0 0.0
        %795 = vmatprep.subr.mxu0 0.0
        %796 = vmatpush1.msra.mxu0 0.0
        %797 = vmatprep.subr.mxu0 0.0
        %798 = vmatpush1.msra.mxu0 0.0
        %799 = vmatprep.subr.mxu0 0.0
        %800 = vmatpush1.msra.mxu0 0.0
        %801 = vmatprep.subr.mxu0 0.0
        %802 = vmatpush1.msra.mxu0 0.0
        %803 = vmatprep.subr.mxu0 0.0
        %804 = vmatpush1.msra.mxu0 0.0
        %805 = vmatprep.subr.mxu0 0.0
        %806 = vmatpush1.msra.mxu0 0.0
        %807 = vmatprep.subr.mxu0 0.0
        %808 = vmatpush1.msra.mxu0 0.0
        %809 = vmatprep.subr.mxu0 0.0
        %810 = vmatpush1.msra.mxu0 0.0
        %811 = vmatprep.subr.mxu0 0.0
        %812 = vmatpush1.msra.mxu0 0.0
        %813 = vmatprep.subr.mxu0 0.0
        %814 = vmatpush1.msra.mxu0 0.0
        %815 = vmatprep.subr.mxu0 0.0
        %816 = vmatpush1.msra.mxu0 0.0
        %817 = vmatprep.subr.mxu0 0.0
        %818 = vmatpush1.msra.mxu0 0.0
        %819 = vmatprep.subr.mxu0 0.0
        %820 = vmatpush1.msra.mxu0 0.0
        %821 = vmatprep.subr.mxu0 0.0
        %822 = vmatpush1.msra.mxu0 0.0
        %823 = vmatprep.mubr.f32.mxu0 0.0
        %824 = vmatmul.mubr.f32.gmra.mrb[0].mxu0 %v754
        %v825 = vpop.f32.mrb[0].mxu0
        %v826 = vadd.f32 0.0, %v825
        %v827 = vpop.f32.mrb[0].mxu0
        %v828 = vadd.f32 0.0, %v827
        %829 = vmatprep.mubr.f32.mxu0 0.0
        %830 = vmatmul.mubr.f32.gmra.mrb[0].mxu0 %v757
        %v831 = vpop.f32.mrb[0].mxu0
        %v832 = vadd.f32 0.0, %v831
        %v833 = vpop.f32.mrb[0].mxu0
        %v834 = vadd.f32 0.0, %v833
        %835 = vdwg.mxu0
        %836 = vmatprep.subr.mxu0 %v748
        %837 = vmatpush1.msra.mxu0 %v747
        %838 = vmatprep.subr.mxu0 0.0
        %839 = vmatpush1.msra.mxu0 0.0
        %840 = vmatprep.subr.mxu0 0.0
        %841 = vmatpush1.msra.mxu0 0.0
        %842 = vmatprep.subr.mxu0 0.0
        %843 = vmatpush1.msra.mxu0 0.0
        %844 = vmatprep.subr.mxu0 0.0
        %845 = vmatpush1.msra.mxu0 0.0
        %846 = vmatprep.subr.mxu0 0.0
        %847 = vmatpush1.msra.mxu0 0.0
        %848 = vmatprep.subr.mxu0 0.0
        %849 = vmatpush1.msra.mxu0 0.0
        %850 = vmatprep.subr.mxu0 0.0
        %851 = vmatpush1.msra.mxu0 0.0
        %852 = vmatprep.subr.mxu0 0.0
        %853 = vmatpush1.msra.mxu0 0.0
        %854 = vmatprep.subr.mxu0 0.0
        %855 = vmatpush1.msra.mxu0 0.0
        %856 = vmatprep.subr.mxu0 0.0
        %857 = vmatpush1.msra.mxu0 0.0
        %858 = vmatprep.subr.mxu0 0.0
        %859 = vmatpush1.msra.mxu0 0.0
        %860 = vmatprep.subr.mxu0 0.0
        %861 = vmatpush1.msra.mxu0 0.0
        %862 = vmatprep.subr.mxu0 0.0
        %863 = vmatpush1.msra.mxu0 0.0
        %864 = vmatprep.subr.mxu0 0.0
        %865 = vmatpush1.msra.mxu0 0.0
        %866 = vmatprep.subr.mxu0 0.0
        %867 = vmatpush1.msra.mxu0 0.0
        %868 = vmatprep.subr.mxu0 0.0
        %869 = vmatpush1.msra.mxu0 0.0
        %870 = vmatprep.subr.mxu0 0.0
        %871 = vmatpush1.msra.mxu0 0.0
        %872 = vmatprep.subr.mxu0 0.0
        %873 = vmatpush1.msra.mxu0 0.0
        %874 = vmatprep.subr.mxu0 0.0
        %875 = vmatpush1.msra.mxu0 0.0
        %876 = vmatprep.subr.mxu0 0.0
        %877 = vmatpush1.msra.mxu0 0.0
        %878 = vmatprep.subr.mxu0 0.0
        %879 = vmatpush1.msra.mxu0 0.0
        %880 = vmatprep.subr.mxu0 0.0
        %881 = vmatpush1.msra.mxu0 0.0
        %882 = vmatprep.subr.mxu0 0.0
        %883 = vmatpush1.msra.mxu0 0.0
        %884 = vmatprep.subr.mxu0 0.0
        %885 = vmatpush1.msra.mxu0 0.0
        %886 = vmatprep.subr.mxu0 0.0
        %887 = vmatpush1.msra.mxu0 0.0
        %888 = vmatprep.subr.mxu0 0.0
        %889 = vmatpush1.msra.mxu0 0.0
        %890 = vmatprep.subr.mxu0 0.0
        %891 = vmatpush1.msra.mxu0 0.0
        %892 = vmatprep.subr.mxu0 0.0
        %893 = vmatpush1.msra.mxu0 0.0
        %894 = vmatprep.subr.mxu0 0.0
        %895 = vmatpush1.msra.mxu0 0.0
        %896 = vmatprep.subr.mxu0 0.0
        %897 = vmatpush1.msra.mxu0 0.0
        %898 = vmatprep.subr.mxu0 0.0
        %899 = vmatpush1.msra.mxu0 0.0
        %900 = vmatprep.mubr.f32.mxu0 0.0
        %901 = vmatmul.mubr.f32.gmra.mrb[0].mxu0 %v754
        %v902 = vpop.f32.mrb[0].mxu0
        %v903 = vadd.f32 0.0, %v902
        %v904 = vpop.f32.mrb[0].mxu0
        %v905 = vadd.f32 0.0, %v904
        %906 = vmatprep.mubr.f32.mxu0 0.0
        %907 = vmatmul.mubr.f32.gmra.mrb[0].mxu0 %v757
        %v908 = vpop.f32.mrb[0].mxu0
        %v909 = vadd.f32 0.0, %v908
        %v910 = vpop.f32.mrb[0].mxu0
        %v911 = vadd.f32 0.0, %v910
        %912 = vdwg.mxu0
        %v914 = vsel %vm752, %v579, 0
        %v917 = vsel %vm752, %v580, 0
        %919 = vmatprep.subr.mxu0 %v431
        %920 = vmatpush1.msra.mxu0 %v430
        %921 = vmatprep.subr.mxu0 0.0
        %922 = vmatpush1.msra.mxu0 0.0
        %923 = vmatprep.subr.mxu0 0.0
        %924 = vmatpush1.msra.mxu0 0.0
        %925 = vmatprep.subr.mxu0 0.0
        %926 = vmatpush1.msra.mxu0 0.0
        %927 = vmatprep.subr.mxu0 0.0
        %928 = vmatpush1.msra.mxu0 0.0
        %929 = vmatprep.subr.mxu0 0.0
        %930 = vmatpush1.msra.mxu0 0.0
        %931 = vmatprep.subr.mxu0 0.0
        %932 = vmatpush1.msra.mxu0 0.0
        %933 = vmatprep.subr.mxu0 0.0
        %934 = vmatpush1.msra.mxu0 0.0
        %935 = vmatprep.subr.mxu0 0.0
        %936 = vmatpush1.msra.mxu0 0.0
        %937 = vmatprep.subr.mxu0 0.0
        %938 = vmatpush1.msra.mxu0 0.0
        %939 = vmatprep.subr.mxu0 0.0
        %940 = vmatpush1.msra.mxu0 0.0
        %941 = vmatprep.subr.mxu0 0.0
        %942 = vmatpush1.msra.mxu0 0.0
        %943 = vmatprep.subr.mxu0 0.0
        %944 = vmatpush1.msra.mxu0 0.0
        %945 = vmatprep.subr.mxu0 0.0
        %946 = vmatpush1.msra.mxu0 0.0
        %947 = vmatprep.subr.mxu0 0.0
        %948 = vmatpush1.msra.mxu0 0.0
        %949 = vmatprep.subr.mxu0 0.0
        %950 = vmatpush1.msra.mxu0 0.0
        %951 = vmatprep.subr.mxu0 0.0
        %952 = vmatpush1.msra.mxu0 0.0
        %953 = vmatprep.subr.mxu0 0.0
        %954 = vmatpush1.msra.mxu0 0.0
        %955 = vmatprep.subr.mxu0 0.0
        %956 = vmatpush1.msra.mxu0 0.0
        %957 = vmatprep.subr.mxu0 0.0
        %958 = vmatpush1.msra.mxu0 0.0
        %959 = vmatprep.subr.mxu0 0.0
        %960 = vmatpush1.msra.mxu0 0.0
        %961 = vmatprep.subr.mxu0 0.0
        %962 = vmatpush1.msra.mxu0 0.0
        %963 = vmatprep.subr.mxu0 0.0
        %964 = vmatpush1.msra.mxu0 0.0
        %965 = vmatprep.subr.mxu0 0.0
        %966 = vmatpush1.msra.mxu0 0.0
        %967 = vmatprep.subr.mxu0 0.0
        %968 = vmatpush1.msra.mxu0 0.0
        %969 = vmatprep.subr.mxu0 0.0
        %970 = vmatpush1.msra.mxu0 0.0
        %971 = vmatprep.subr.mxu0 0.0
        %972 = vmatpush1.msra.mxu0 0.0
        %973 = vmatprep.subr.mxu0 0.0
        %974 = vmatpush1.msra.mxu0 0.0
        %975 = vmatprep.subr.mxu0 0.0
        %976 = vmatpush1.msra.mxu0 0.0
        %977 = vmatprep.subr.mxu0 0.0
        %978 = vmatpush1.msra.mxu0 0.0
        %979 = vmatprep.subr.mxu0 0.0
        %980 = vmatpush1.msra.mxu0 0.0
        %981 = vmatprep.subr.mxu0 0.0
        %982 = vmatpush1.msra.mxu0 0.0
        %983 = vmatprep.mubr.f32.mxu0 0.0
        %984 = vmatmul.mubr.f32.gmra.mrb[0].mxu0 %v914
        %v985 = vpop.f32.mrb[0].mxu0
        %v986 = vadd.f32 %v826, %v985
        %v987 = vpop.f32.mrb[0].mxu0
        %v988 = vadd.f32 %v828, %v987
        %989 = vmatprep.mubr.f32.mxu0 0.0
        %990 = vmatmul.mubr.f32.gmra.mrb[0].mxu0 %v917
        %v991 = vpop.f32.mrb[0].mxu0
        %v992 = vadd.f32 %v832, %v991
        %v993 = vpop.f32.mrb[0].mxu0
        %v994 = vadd.f32 %v834, %v993
        %995 = vdwg.mxu0
        %996 = vmatprep.subr.mxu0 %v433
        %997 = vmatpush1.msra.mxu0 %v432
        %998 = vmatprep.subr.mxu0 0.0
        %999 = vmatpush1.msra.mxu0 0.0
        %1000 = vmatprep.subr.mxu0 0.0
        %1001 = vmatpush1.msra.mxu0 0.0
        %1002 = vmatprep.subr.mxu0 0.0
        %1003 = vmatpush1.msra.mxu0 0.0
        %1004 = vmatprep.subr.mxu0 0.0
        %1005 = vmatpush1.msra.mxu0 0.0
        %1006 = vmatprep.subr.mxu0 0.0
        %1007 = vmatpush1.msra.mxu0 0.0
        %1008 = vmatprep.subr.mxu0 0.0
        %1009 = vmatpush1.msra.mxu0 0.0
        %1010 = vmatprep.subr.mxu0 0.0
        %1011 = vmatpush1.msra.mxu0 0.0
        %1012 = vmatprep.subr.mxu0 0.0
        %1013 = vmatpush1.msra.mxu0 0.0
        %1014 = vmatprep.subr.mxu0 0.0
        %1015 = vmatpush1.msra.mxu0 0.0
        %1016 = vmatprep.subr.mxu0 0.0
        %1017 = vmatpush1.msra.mxu0 0.0
        %1018 = vmatprep.subr.mxu0 0.0
        %1019 = vmatpush1.msra.mxu0 0.0
        %1020 = vmatprep.subr.mxu0 0.0
        %1021 = vmatpush1.msra.mxu0 0.0
        %1022 = vmatprep.subr.mxu0 0.0
        %1023 = vmatpush1.msra.mxu0 0.0
        %1024 = vmatprep.subr.mxu0 0.0
        %1025 = vmatpush1.msra.mxu0 0.0
        %1026 = vmatprep.subr.mxu0 0.0
        %1027 = vmatpush1.msra.mxu0 0.0
        %1028 = vmatprep.subr.mxu0 0.0
        %1029 = vmatpush1.msra.mxu0 0.0
        %1030 = vmatprep.subr.mxu0 0.0
        %1031 = vmatpush1.msra.mxu0 0.0
        %1032 = vmatprep.subr.mxu0 0.0
        %1033 = vmatpush1.msra.mxu0 0.0
        %1034 = vmatprep.subr.mxu0 0.0
        %1035 = vmatpush1.msra.mxu0 0.0
        %1036 = vmatprep.subr.mxu0 0.0
        %1037 = vmatpush1.msra.mxu0 0.0
        %1038 = vmatprep.subr.mxu0 0.0
        %1039 = vmatpush1.msra.mxu0 0.0
        %1040 = vmatprep.subr.mxu0 0.0
        %1041 = vmatpush1.msra.mxu0 0.0
        %1042 = vmatprep.subr.mxu0 0.0
        %1043 = vmatpush1.msra.mxu0 0.0
        %1044 = vmatprep.subr.mxu0 0.0
        %1045 = vmatpush1.msra.mxu0 0.0
        %1046 = vmatprep.subr.mxu0 0.0
        %1047 = vmatpush1.msra.mxu0 0.0
        %1048 = vmatprep.subr.mxu0 0.0
        %1049 = vmatpush1.msra.mxu0 0.0
        %1050 = vmatprep.subr.mxu0 0.0
        %1051 = vmatpush1.msra.mxu0 0.0
        %1052 = vmatprep.subr.mxu0 0.0
        %1053 = vmatpush1.msra.mxu0 0.0
        %1054 = vmatprep.subr.mxu0 0.0
        %1055 = vmatpush1.msra.mxu0 0.0
        %1056 = vmatprep.subr.mxu0 0.0
        %1057 = vmatpush1.msra.mxu0 0.0
        %1058 = vmatprep.subr.mxu0 0.0
        %1059 = vmatpush1.msra.mxu0 0.0
        %1060 = vmatprep.mubr.f32.mxu0 0.0
        %1061 = vmatmul.mubr.f32.gmra.mrb[0].mxu0 %v914
        %v1062 = vpop.f32.mrb[0].mxu0
        %v1063 = vadd.f32 %v903, %v1062
        %v1064 = vpop.f32.mrb[0].mxu0
        %v1065 = vadd.f32 %v905, %v1064
        %1066 = vmatprep.mubr.f32.mxu0 0.0
        %1067 = vmatmul.mubr.f32.gmra.mrb[0].mxu0 %v917
        %v1068 = vpop.f32.mrb[0].mxu0
        %v1069 = vadd.f32 %v909, %v1068
        %v1070 = vpop.f32.mrb[0].mxu0
        %v1071 = vadd.f32 %v911, %v1070
        %1072 = vdwg.mxu0
        %1073 = vrot.lane.b32.xlu0 %v745, 2
        %v1074 = vpop.permute.xlu0 %1073
        %1075 = vrot.lane.b32.xlu0 %v746, 2
        %v1076 = vpop.permute.xlu0 %1075
        %1077 = vrot.lane.b32.xlu0 %v747, 2
        %v1078 = vpop.permute.xlu0 %1077
        %1079 = vrot.lane.b32.xlu0 %v748, 2
        %v1080 = vpop.permute.xlu0 %1079
        %v1081 = vsel %vm589, %v1078, %v1080
        %v1082 = vsel %vm589, %v1076, %v1078
        %v1083 = vsel %vm589, %v1074, %v1076
        %v1084 = vsel %vm589, %v1080, %v1074
        %v1085 = vsel %vm463, %v1084, -3e+38
        %v1086 = vsel %vm464, %v1083, -3e+38
        %v1087 = vsel %vm465, %v1082, -3e+38
        %v1088 = vsel %vm466, %v1081, -3e+38
        %v1089 = vmax.f32 %v745, %v1085
        %v1090 = vmax.f32 %v746, %v1086
        %v1091 = vmax.f32 %v747, %v1087
        %v1092 = vmax.f32 %v748, %v1088
        %1093 = vrot.lane.b32.xlu0 %v745, 1
        %v1094 = vpop.permute.xlu0 %1093
        %1095 = vrot.lane.b32.xlu0 %v746, 1
        %v1096 = vpop.permute.xlu0 %1095
        %1097 = vrot.lane.b32.xlu0 %v747, 1
        %v1098 = vpop.permute.xlu0 %1097
        %1099 = vrot.lane.b32.xlu0 %v748, 1
        %v1100 = vpop.permute.xlu0 %1099
        %v1101 = vsel %vm610, %v1098, %v1100
        %v1102 = vsel %vm610, %v1096, %v1098
        %v1103 = vsel %vm610, %v1094, %v1096
        %v1104 = vsel %vm610, %v1100, %v1094
        %v1105 = vsel %vm479, %v1104, -3e+38
        %v1106 = vsel %vm480, %v1103, -3e+38
        %v1107 = vsel %vm481, %v1102, -3e+38
        %v1108 = vsel %vm482, %v1101, -3e+38
        %v1109 = vmax.f32 %v1089, %v1105
        %v1110 = vmax.f32 %v1090, %v1106
        %v1111 = vmax.f32 %v1091, %v1107
        %v1112 = vmax.f32 %v1092, %v1108
        %1113 = vrot.lane.b32.xlu0 %v745, 127
        %v1114 = vpop.permute.xlu0 %1113
        %1115 = vrot.lane.b32.xlu0 %v746, 127
        %v1116 = vpop.permute.xlu0 %1115
        %1117 = vrot.lane.b32.xlu0 %v747, 127
        %v1118 = vpop.permute.xlu0 %1117
        %1119 = vrot.lane.b32.xlu0 %v748, 127
        %v1120 = vpop.permute.xlu0 %1119
        %v1121 = vsel %vm631, %v1118, %v1120
        %v1122 = vsel %vm631, %v1116, %v1118
        %v1123 = vsel %vm631, %v1114, %v1116
        %v1124 = vsel %vm631, %v1120, %v1114
        %v1125 = vsel %vm495, %v1123, -3e+38
        %v1126 = vsel %vm496, %v1122, -3e+38
        %v1127 = vsel %vm497, %v1121, -3e+38
        %v1128 = vsel %vm498, %v1124, -3e+38
        %v1129 = vmax.f32 %v1109, %v1125
        %v1130 = vmax.f32 %v1110, %v1126
        %v1131 = vmax.f32 %v1111, %v1127
        %v1132 = vmax.f32 %v1112, %v1128
        %1133 = vrot.lane.b32.xlu0 %v745, 126
        %v1134 = vpop.permute.xlu0 %1133
        %1135 = vrot.lane.b32.xlu0 %v746, 126
        %v1136 = vpop.permute.xlu0 %1135
        %1137 = vrot.lane.b32.xlu0 %v747, 126
        %v1138 = vpop.permute.xlu0 %1137
        %1139 = vrot.lane.b32.xlu0 %v748, 126
        %v1140 = vpop.permute.xlu0 %1139
        %v1141 = vsel %vm652, %v1138, %v1140
        %v1142 = vsel %vm652, %v1136, %v1138
        %v1143 = vsel %vm652, %v1134, %v1136
        %v1144 = vsel %vm652, %v1140, %v1134
        %v1145 = vsel %vm511, %v1143, -3e+38
        %v1146 = vsel %vm512, %v1142, -3e+38
        %v1147 = vsel %vm513, %v1141, -3e+38
        %v1148 = vsel %vm514, %v1144, -3e+38
        %v1149 = vmax.f32 %v1129, %v1145
        %v1150 = vmax.f32 %v1130, %v1146
        %v1151 = vmax.f32 %v1131, %v1147
        %v1152 = vmax.f32 %v1132, %v1148
        %1153 = vrot.lane.b32.xlu0 %v1149, 32
        %v1154 = vpop.permute.xlu0 %1153
        %1155 = vrot.lane.b32.xlu0 %v1150, 32
        %v1156 = vpop.permute.xlu0 %1155
        %1157 = vrot.lane.b32.xlu0 %v1151, 32
        %v1158 = vpop.permute.xlu0 %1157
        %1159 = vrot.lane.b32.xlu0 %v1152, 32
        %v1160 = vpop.permute.xlu0 %1159
        %v1161 = vsel %vm673, %v1158, %v1160
        %v1162 = vsel %vm673, %v1156, %v1158
        %v1163 = vsel %vm673, %v1154, %v1156
        %v1164 = vsel %vm673, %v1160, %v1154
        %v1165 = vsel %vm527, %v1164, -3e+38
        %v1166 = vsel %vm528, %v1163, -3e+38
        %v1167 = vsel %vm529, %v1162, -3e+38
        %v1168 = vsel %vm530, %v1161, -3e+38
        %v1169 = vmax.f32 %v1149, %v1165
        %v1170 = vmax.f32 %v1150, %v1166
        %v1171 = vmax.f32 %v1151, %v1167
        %v1172 = vmax.f32 %v1152, %v1168
        %1173 = vrot.lane.b32.xlu0 %v1149, 16
        %v1174 = vpop.permute.xlu0 %1173
        %1175 = vrot.lane.b32.xlu0 %v1150, 16
        %v1176 = vpop.permute.xlu0 %1175
        %1177 = vrot.lane.b32.xlu0 %v1151, 16
        %v1178 = vpop.permute.xlu0 %1177
        %1179 = vrot.lane.b32.xlu0 %v1152, 16
        %v1180 = vpop.permute.xlu0 %1179
        %v1181 = vsel %vm694, %v1178, %v1180
        %v1182 = vsel %vm694, %v1176, %v1178
        %v1183 = vsel %vm694, %v1174, %v1176
        %v1184 = vsel %vm694, %v1180, %v1174
        %v1185 = vsel %vm543, %v1184, -3e+38
        %v1186 = vsel %vm544, %v1183, -3e+38
        %v1187 = vsel %vm545, %v1182, -3e+38
        %v1188 = vsel %vm546, %v1181, -3e+38
        %v1189 = vmax.f32 %v1169, %v1185
        %v1190 = vmax.f32 %v1170, %v1186
        %v1191 = vmax.f32 %v1171, %v1187
        %v1192 = vmax.f32 %v1172, %v1188
        %1193 = vrot.lane.b32.xlu0 %v1149, 112
        %v1194 = vpop.permute.xlu0 %1193
        %1195 = vrot.lane.b32.xlu0 %v1150, 112
        %v1196 = vpop.permute.xlu0 %1195
        %1197 = vrot.lane.b32.xlu0 %v1151, 112
        %v1198 = vpop.permute.xlu0 %1197
        %1199 = vrot.lane.b32.xlu0 %v1152, 112
        %v1200 = vpop.permute.xlu0 %1199
        %v1201 = vsel %vm715, %v1198, %v1200
        %v1202 = vsel %vm715, %v1196, %v1198
        %v1203 = vsel %vm715, %v1194, %v1196
        %v1204 = vsel %vm715, %v1200, %v1194
        %v1205 = vsel %vm559, %v1203, -3e+38
        %v1206 = vsel %vm560, %v1202, -3e+38
        %v1207 = vsel %vm561, %v1201, -3e+38
        %v1208 = vsel %vm562, %v1204, -3e+38
        %v1209 = vmax.f32 %v1189, %v1205
        %v1210 = vmax.f32 %v1190, %v1206
        %v1211 = vmax.f32 %v1191, %v1207
        %v1212 = vmax.f32 %v1192, %v1208
        %1213 = vrot.lane.b32.xlu0 %v1149, 96
        %v1214 = vpop.permute.xlu0 %1213
        %1215 = vrot.lane.b32.xlu0 %v1150, 96
        %v1216 = vpop.permute.xlu0 %1215
        %1217 = vrot.lane.b32.xlu0 %v1151, 96
        %v1218 = vpop.permute.xlu0 %1217
        %1219 = vrot.lane.b32.xlu0 %v1152, 96
        %v1220 = vpop.permute.xlu0 %1219
        %v1221 = vsel %vm736, %v1218, %v1220
        %v1222 = vsel %vm736, %v1216, %v1218
        %v1223 = vsel %vm736, %v1214, %v1216
        %v1224 = vsel %vm736, %v1220, %v1214
        %v1225 = vsel %vm575, %v1223, -3e+38
        %v1226 = vsel %vm576, %v1222, -3e+38
        %v1227 = vsel %vm577, %v1221, -3e+38
        %v1228 = vsel %vm578, %v1224, -3e+38
        %v1229 = vmax.f32 %v1209, %v1225
        %v1230 = vmax.f32 %v1210, %v1226
        %v1231 = vmax.f32 %v1211, %v1227
        %v1232 = vmax.f32 %v1212, %v1228
        %s1233 = scalar_lea.vmem %s3, 32
        %v1234 = vld [vmem:[%s1233] sm:$0xff]
        %v1235 = vld [vmem:[%s1233 + $0x8] sm:$0xff]
        %v1237 = vsel %vm752, %v1234, 0
        %v1240 = vsel %vm752, %v1235, 0
        %1242 = vmatprep.subr.mxu0 %v1230
        %1243 = vmatpush1.msra.mxu0 %v1229
        %1244 = vmatprep.subr.mxu0 0.0
        %1245 = vmatpush1.msra.mxu0 0.0
        %1246 = vmatprep.subr.mxu0 0.0
        %1247 = vmatpush1.msra.mxu0 0.0
        %1248 = vmatprep.subr.mxu0 0.0
        %1249 = vmatpush1.msra.mxu0 0.0
        %1250 = vmatprep.subr.mxu0 0.0
        %1251 = vmatpush1.msra.mxu0 0.0
        %1252 = vmatprep.subr.mxu0 0.0
        %1253 = vmatpush1.msra.mxu0 0.0
        %1254 = vmatprep.subr.mxu0 0.0
        %1255 = vmatpush1.msra.mxu0 0.0
        %1256 = vmatprep.subr.mxu0 0.0
        %1257 = vmatpush1.msra.mxu0 0.0
        %1258 = vmatprep.subr.mxu0 0.0
        %1259 = vmatpush1.msra.mxu0 0.0
        %1260 = vmatprep.subr.mxu0 0.0
        %1261 = vmatpush1.msra.mxu0 0.0
        %1262 = vmatprep.subr.mxu0 0.0
        %1263 = vmatpush1.msra.mxu0 0.0
        %1264 = vmatprep.subr.mxu0 0.0
        %1265 = vmatpush1.msra.mxu0 0.0
        %1266 = vmatprep.subr.mxu0 0.0
        %1267 = vmatpush1.msra.mxu0 0.0
        %1268 = vmatprep.subr.mxu0 0.0
        %1269 = vmatpush1.msra.mxu0 0.0
        %1270 = vmatprep.subr.mxu0 0.0
        %1271 = vmatpush1.msra.mxu0 0.0
        %1272 = vmatprep.subr.mxu0 0.0
        %1273 = vmatpush1.msra.mxu0 0.0
        %1274 = vmatprep.subr.mxu0 0.0
        %1275 = vmatpush1.msra.mxu0 0.0
        %1276 = vmatprep.subr.mxu0 0.0
        %1277 = vmatpush1.msra.mxu0 0.0
        %1278 = vmatprep.subr.mxu0 0.0
        %1279 = vmatpush1.msra.mxu0 0.0
        %1280 = vmatprep.subr.mxu0 0.0
        %1281 = vmatpush1.msra.mxu0 0.0
        %1282 = vmatprep.subr.mxu0 0.0
        %1283 = vmatpush1.msra.mxu0 0.0
        %1284 = vmatprep.subr.mxu0 0.0
        %1285 = vmatpush1.msra.mxu0 0.0
        %1286 = vmatprep.subr.mxu0 0.0
        %1287 = vmatpush1.msra.mxu0 0.0
        %1288 = vmatprep.subr.mxu0 0.0
        %1289 = vmatpush1.msra.mxu0 0.0
        %1290 = vmatprep.subr.mxu0 0.0
        %1291 = vmatpush1.msra.mxu0 0.0
        %1292 = vmatprep.subr.mxu0 0.0
        %1293 = vmatpush1.msra.mxu0 0.0
        %1294 = vmatprep.subr.mxu0 0.0
        %1295 = vmatpush1.msra.mxu0 0.0
        %1296 = vmatprep.subr.mxu0 0.0
        %1297 = vmatpush1.msra.mxu0 0.0
        %1298 = vmatprep.subr.mxu0 0.0
        %1299 = vmatpush1.msra.mxu0 0.0
        %1300 = vmatprep.subr.mxu0 0.0
        %1301 = vmatpush1.msra.mxu0 0.0
        %1302 = vmatprep.subr.mxu0 0.0
        %1303 = vmatpush1.msra.mxu0 0.0
        %1304 = vmatprep.subr.mxu0 0.0
        %1305 = vmatpush1.msra.mxu0 0.0
        %1306 = vmatprep.mubr.f32.mxu0 0.0
        %1307 = vmatmul.mubr.f32.gmra.mrb[0].mxu0 %v1237
        %v1308 = vpop.f32.mrb[0].mxu0
        %v1309 = vadd.f32 0.0, %v1308
        %v1310 = vpop.f32.mrb[0].mxu0
        %v1311 = vadd.f32 0.0, %v1310
        %1312 = vmatprep.mubr.f32.mxu0 0.0
        %1313 = vmatmul.mubr.f32.gmra.mrb[0].mxu0 %v1240
        %v1314 = vpop.f32.mrb[0].mxu0
        %v1315 = vadd.f32 0.0, %v1314
        %v1316 = vpop.f32.mrb[0].mxu0
        %v1317 = vadd.f32 0.0, %v1316
        %1318 = vdwg.mxu0
        %1319 = vmatprep.subr.mxu0 %v1232
        %1320 = vmatpush1.msra.mxu0 %v1231
        %1321 = vmatprep.subr.mxu0 0.0
        %1322 = vmatpush1.msra.mxu0 0.0
        %1323 = vmatprep.subr.mxu0 0.0
        %1324 = vmatpush1.msra.mxu0 0.0
        %1325 = vmatprep.subr.mxu0 0.0
        %1326 = vmatpush1.msra.mxu0 0.0
        %1327 = vmatprep.subr.mxu0 0.0
        %1328 = vmatpush1.msra.mxu0 0.0
        %1329 = vmatprep.subr.mxu0 0.0
        %1330 = vmatpush1.msra.mxu0 0.0
        %1331 = vmatprep.subr.mxu0 0.0
        %1332 = vmatpush1.msra.mxu0 0.0
        %1333 = vmatprep.subr.mxu0 0.0
        %1334 = vmatpush1.msra.mxu0 0.0
        %1335 = vmatprep.subr.mxu0 0.0
        %1336 = vmatpush1.msra.mxu0 0.0
        %1337 = vmatprep.subr.mxu0 0.0
        %1338 = vmatpush1.msra.mxu0 0.0
        %1339 = vmatprep.subr.mxu0 0.0
        %1340 = vmatpush1.msra.mxu0 0.0
        %1341 = vmatprep.subr.mxu0 0.0
        %1342 = vmatpush1.msra.mxu0 0.0
        %1343 = vmatprep.subr.mxu0 0.0
        %1344 = vmatpush1.msra.mxu0 0.0
        %1345 = vmatprep.subr.mxu0 0.0
        %1346 = vmatpush1.msra.mxu0 0.0
        %1347 = vmatprep.subr.mxu0 0.0
        %1348 = vmatpush1.msra.mxu0 0.0
        %1349 = vmatprep.subr.mxu0 0.0
        %1350 = vmatpush1.msra.mxu0 0.0
        %1351 = vmatprep.subr.mxu0 0.0
        %1352 = vmatpush1.msra.mxu0 0.0
        %1353 = vmatprep.subr.mxu0 0.0
        %1354 = vmatpush1.msra.mxu0 0.0
        %1355 = vmatprep.subr.mxu0 0.0
        %1356 = vmatpush1.msra.mxu0 0.0
        %1357 = vmatprep.subr.mxu0 0.0
        %1358 = vmatpush1.msra.mxu0 0.0
        %1359 = vmatprep.subr.mxu0 0.0
        %1360 = vmatpush1.msra.mxu0 0.0
        %1361 = vmatprep.subr.mxu0 0.0
        %1362 = vmatpush1.msra.mxu0 0.0
        %1363 = vmatprep.subr.mxu0 0.0
        %1364 = vmatpush1.msra.mxu0 0.0
        %1365 = vmatprep.subr.mxu0 0.0
        %1366 = vmatpush1.msra.mxu0 0.0
        %1367 = vmatprep.subr.mxu0 0.0
        %1368 = vmatpush1.msra.mxu0 0.0
        %1369 = vmatprep.subr.mxu0 0.0
        %1370 = vmatpush1.msra.mxu0 0.0
        %1371 = vmatprep.subr.mxu0 0.0
        %1372 = vmatpush1.msra.mxu0 0.0
        %1373 = vmatprep.subr.mxu0 0.0
        %1374 = vmatpush1.msra.mxu0 0.0
        %1375 = vmatprep.subr.mxu0 0.0
        %1376 = vmatpush1.msra.mxu0 0.0
        %1377 = vmatprep.subr.mxu0 0.0
        %1378 = vmatpush1.msra.mxu0 0.0
        %1379 = vmatprep.subr.mxu0 0.0
        %1380 = vmatpush1.msra.mxu0 0.0
        %1381 = vmatprep.subr.mxu0 0.0
        %1382 = vmatpush1.msra.mxu0 0.0
        %1383 = vmatprep.mubr.f32.mxu0 0.0
        %1384 = vmatmul.mubr.f32.gmra.mrb[0].mxu0 %v1237
        %v1385 = vpop.f32.mrb[0].mxu0
        %v1386 = vadd.f32 0.0, %v1385
        %v1387 = vpop.f32.mrb[0].mxu0
        %v1388 = vadd.f32 0.0, %v1387
        %1389 = vmatprep.mubr.f32.mxu0 0.0
        %1390 = vmatmul.mubr.f32.gmra.mrb[0].mxu0 %v1240
        %v1391 = vpop.f32.mrb[0].mxu0
        %v1392 = vadd.f32 0.0, %v1391
        %v1393 = vpop.f32.mrb[0].mxu0
        %v1394 = vadd.f32 0.0, %v1393
        %1395 = vdwg.mxu0
        %v1396 = vadd.f32 %v986, %v1309
        %v1397 = vadd.f32 %v988, %v1311
        %v1398 = vadd.f32 %v1063, %v1386
        %v1399 = vadd.f32 %v1065, %v1388
        %v1400 = vadd.f32 %v992, %v1315
        %v1401 = vadd.f32 %v994, %v1317
        %v1402 = vadd.f32 %v1069, %v1392
        %v1403 = vadd.f32 %v1071, %v1394
        %1404 = vrot.lane.b32.xlu0 %v1229, 2
        %v1405 = vpop.permute.xlu0 %1404
        %1406 = vrot.lane.b32.xlu0 %v1230, 2
        %v1407 = vpop.permute.xlu0 %1406
        %1408 = vrot.lane.b32.xlu0 %v1231, 2
        %v1409 = vpop.permute.xlu0 %1408
        %1410 = vrot.lane.b32.xlu0 %v1232, 2
        %v1411 = vpop.permute.xlu0 %1410
        %v1412 = vsel %vm589, %v1409, %v1411
        %v1413 = vsel %vm589, %v1407, %v1409
        %v1414 = vsel %vm589, %v1405, %v1407
        %v1415 = vsel %vm589, %v1411, %v1405
        %v1416 = vsel %vm463, %v1415, -3e+38
        %v1417 = vsel %vm464, %v1414, -3e+38
        %v1418 = vsel %vm465, %v1413, -3e+38
        %v1419 = vsel %vm466, %v1412, -3e+38
        %v1420 = vmax.f32 %v1229, %v1416
        %v1421 = vmax.f32 %v1230, %v1417
        %v1422 = vmax.f32 %v1231, %v1418
        %v1423 = vmax.f32 %v1232, %v1419
        %1424 = vrot.lane.b32.xlu0 %v1229, 1
        %v1425 = vpop.permute.xlu0 %1424
        %1426 = vrot.lane.b32.xlu0 %v1230, 1
        %v1427 = vpop.permute.xlu0 %1426
        %1428 = vrot.lane.b32.xlu0 %v1231, 1
        %v1429 = vpop.permute.xlu0 %1428
        %1430 = vrot.lane.b32.xlu0 %v1232, 1
        %v1431 = vpop.permute.xlu0 %1430
        %v1432 = vsel %vm610, %v1429, %v1431
        %v1433 = vsel %vm610, %v1427, %v1429
        %v1434 = vsel %vm610, %v1425, %v1427
        %v1435 = vsel %vm610, %v1431, %v1425
        %v1436 = vsel %vm479, %v1435, -3e+38
        %v1437 = vsel %vm480, %v1434, -3e+38
        %v1438 = vsel %vm481, %v1433, -3e+38
        %v1439 = vsel %vm482, %v1432, -3e+38
        %v1440 = vmax.f32 %v1420, %v1436
        %v1441 = vmax.f32 %v1421, %v1437
        %v1442 = vmax.f32 %v1422, %v1438
        %v1443 = vmax.f32 %v1423, %v1439
        %1444 = vrot.lane.b32.xlu0 %v1229, 127
        %v1445 = vpop.permute.xlu0 %1444
        %1446 = vrot.lane.b32.xlu0 %v1230, 127
        %v1447 = vpop.permute.xlu0 %1446
        %1448 = vrot.lane.b32.xlu0 %v1231, 127
        %v1449 = vpop.permute.xlu0 %1448
        %1450 = vrot.lane.b32.xlu0 %v1232, 127
        %v1451 = vpop.permute.xlu0 %1450
        %v1452 = vsel %vm631, %v1449, %v1451
        %v1453 = vsel %vm631, %v1447, %v1449
        %v1454 = vsel %vm631, %v1445, %v1447
        %v1455 = vsel %vm631, %v1451, %v1445
        %v1456 = vsel %vm495, %v1454, -3e+38
        %v1457 = vsel %vm496, %v1453, -3e+38
        %v1458 = vsel %vm497, %v1452, -3e+38
        %v1459 = vsel %vm498, %v1455, -3e+38
        %v1460 = vmax.f32 %v1440, %v1456
        %v1461 = vmax.f32 %v1441, %v1457
        %v1462 = vmax.f32 %v1442, %v1458
        %v1463 = vmax.f32 %v1443, %v1459
        %1464 = vrot.lane.b32.xlu0 %v1229, 126
        %v1465 = vpop.permute.xlu0 %1464
        %1466 = vrot.lane.b32.xlu0 %v1230, 126
        %v1467 = vpop.permute.xlu0 %1466
        %1468 = vrot.lane.b32.xlu0 %v1231, 126
        %v1469 = vpop.permute.xlu0 %1468
        %1470 = vrot.lane.b32.xlu0 %v1232, 126
        %v1471 = vpop.permute.xlu0 %1470
        %v1472 = vsel %vm652, %v1469, %v1471
        %v1473 = vsel %vm652, %v1467, %v1469
        %v1474 = vsel %vm652, %v1465, %v1467
        %v1475 = vsel %vm652, %v1471, %v1465
        %v1476 = vsel %vm511, %v1474, -3e+38
        %v1477 = vsel %vm512, %v1473, -3e+38
        %v1478 = vsel %vm513, %v1472, -3e+38
        %v1479 = vsel %vm514, %v1475, -3e+38
        %v1480 = vmax.f32 %v1460, %v1476
        %v1481 = vmax.f32 %v1461, %v1477
        %v1482 = vmax.f32 %v1462, %v1478
        %v1483 = vmax.f32 %v1463, %v1479
        %1484 = vrot.lane.b32.xlu0 %v1480, 32
        %v1485 = vpop.permute.xlu0 %1484
        %1486 = vrot.lane.b32.xlu0 %v1481, 32
        %v1487 = vpop.permute.xlu0 %1486
        %1488 = vrot.lane.b32.xlu0 %v1482, 32
        %v1489 = vpop.permute.xlu0 %1488
        %1490 = vrot.lane.b32.xlu0 %v1483, 32
        %v1491 = vpop.permute.xlu0 %1490
        %v1492 = vsel %vm673, %v1489, %v1491
        %v1493 = vsel %vm673, %v1487, %v1489
        %v1494 = vsel %vm673, %v1485, %v1487
        %v1495 = vsel %vm673, %v1491, %v1485
        %v1496 = vsel %vm527, %v1495, -3e+38
        %v1497 = vsel %vm528, %v1494, -3e+38
        %v1498 = vsel %vm529, %v1493, -3e+38
        %v1499 = vsel %vm530, %v1492, -3e+38
        %v1500 = vmax.f32 %v1480, %v1496
        %v1501 = vmax.f32 %v1481, %v1497
        %v1502 = vmax.f32 %v1482, %v1498
        %v1503 = vmax.f32 %v1483, %v1499
        %1504 = vrot.lane.b32.xlu0 %v1480, 16
        %v1505 = vpop.permute.xlu0 %1504
        %1506 = vrot.lane.b32.xlu0 %v1481, 16
        %v1507 = vpop.permute.xlu0 %1506
        %1508 = vrot.lane.b32.xlu0 %v1482, 16
        %v1509 = vpop.permute.xlu0 %1508
        %1510 = vrot.lane.b32.xlu0 %v1483, 16
        %v1511 = vpop.permute.xlu0 %1510
        %v1512 = vsel %vm694, %v1509, %v1511
        %v1513 = vsel %vm694, %v1507, %v1509
        %v1514 = vsel %vm694, %v1505, %v1507
        %v1515 = vsel %vm694, %v1511, %v1505
        %v1516 = vsel %vm543, %v1515, -3e+38
        %v1517 = vsel %vm544, %v1514, -3e+38
        %v1518 = vsel %vm545, %v1513, -3e+38
        %v1519 = vsel %vm546, %v1512, -3e+38
        %v1520 = vmax.f32 %v1500, %v1516
        %v1521 = vmax.f32 %v1501, %v1517
        %v1522 = vmax.f32 %v1502, %v1518
        %v1523 = vmax.f32 %v1503, %v1519
        %1524 = vrot.lane.b32.xlu0 %v1480, 112
        %v1525 = vpop.permute.xlu0 %1524
        %1526 = vrot.lane.b32.xlu0 %v1481, 112
        %v1527 = vpop.permute.xlu0 %1526
        %1528 = vrot.lane.b32.xlu0 %v1482, 112
        %v1529 = vpop.permute.xlu0 %1528
        %1530 = vrot.lane.b32.xlu0 %v1483, 112
        %v1531 = vpop.permute.xlu0 %1530
        %v1532 = vsel %vm715, %v1529, %v1531
        %v1533 = vsel %vm715, %v1527, %v1529
        %v1534 = vsel %vm715, %v1525, %v1527
        %v1535 = vsel %vm715, %v1531, %v1525
        %v1536 = vsel %vm559, %v1534, -3e+38
        %v1537 = vsel %vm560, %v1533, -3e+38
        %v1538 = vsel %vm561, %v1532, -3e+38
        %v1539 = vsel %vm562, %v1535, -3e+38
        %v1540 = vmax.f32 %v1520, %v1536
        %v1541 = vmax.f32 %v1521, %v1537
        %v1542 = vmax.f32 %v1522, %v1538
        %v1543 = vmax.f32 %v1523, %v1539
        %1544 = vrot.lane.b32.xlu0 %v1480, 96
        %v1545 = vpop.permute.xlu0 %1544
        %1546 = vrot.lane.b32.xlu0 %v1481, 96
        %v1547 = vpop.permute.xlu0 %1546
        %1548 = vrot.lane.b32.xlu0 %v1482, 96
        %v1549 = vpop.permute.xlu0 %1548
        %1550 = vrot.lane.b32.xlu0 %v1483, 96
        %v1551 = vpop.permute.xlu0 %1550
        %v1552 = vsel %vm736, %v1549, %v1551
        %v1553 = vsel %vm736, %v1547, %v1549
        %v1554 = vsel %vm736, %v1545, %v1547
        %v1555 = vsel %vm736, %v1551, %v1545
        %v1556 = vsel %vm575, %v1554, -3e+38
        %v1557 = vsel %vm576, %v1553, -3e+38
        %v1558 = vsel %vm577, %v1552, -3e+38
        %v1559 = vsel %vm578, %v1555, -3e+38
        %v1560 = vmax.f32 %v1540, %v1556
        %v1561 = vmax.f32 %v1541, %v1557
        %v1562 = vmax.f32 %v1542, %v1558
        %v1563 = vmax.f32 %v1543, %v1559
        %s1564 = scalar_lea.vmem %s3, 48
        %v1565 = vld [vmem:[%s1564] sm:$0xff]
        %v1566 = vld [vmem:[%s1564 + $0x8] sm:$0xff]
        %v1568 = vsel %vm752, %v1565, 0
        %v1571 = vsel %vm752, %v1566, 0
        %1573 = vmatprep.subr.mxu0 %v1561
        %1574 = vmatpush1.msra.mxu0 %v1560
        %1575 = vmatprep.subr.mxu0 0.0
        %1576 = vmatpush1.msra.mxu0 0.0
        %1577 = vmatprep.subr.mxu0 0.0
        %1578 = vmatpush1.msra.mxu0 0.0
        %1579 = vmatprep.subr.mxu0 0.0
        %1580 = vmatpush1.msra.mxu0 0.0
        %1581 = vmatprep.subr.mxu0 0.0
        %1582 = vmatpush1.msra.mxu0 0.0
        %1583 = vmatprep.subr.mxu0 0.0
        %1584 = vmatpush1.msra.mxu0 0.0
        %1585 = vmatprep.subr.mxu0 0.0
        %1586 = vmatpush1.msra.mxu0 0.0
        %1587 = vmatprep.subr.mxu0 0.0
        %1588 = vmatpush1.msra.mxu0 0.0
        %1589 = vmatprep.subr.mxu0 0.0
        %1590 = vmatpush1.msra.mxu0 0.0
        %1591 = vmatprep.subr.mxu0 0.0
        %1592 = vmatpush1.msra.mxu0 0.0
        %1593 = vmatprep.subr.mxu0 0.0
        %1594 = vmatpush1.msra.mxu0 0.0
        %1595 = vmatprep.subr.mxu0 0.0
        %1596 = vmatpush1.msra.mxu0 0.0
        %1597 = vmatprep.subr.mxu0 0.0
        %1598 = vmatpush1.msra.mxu0 0.0
        %1599 = vmatprep.subr.mxu0 0.0
        %1600 = vmatpush1.msra.mxu0 0.0
        %1601 = vmatprep.subr.mxu0 0.0
        %1602 = vmatpush1.msra.mxu0 0.0
        %1603 = vmatprep.subr.mxu0 0.0
        %1604 = vmatpush1.msra.mxu0 0.0
        %1605 = vmatprep.subr.mxu0 0.0
        %1606 = vmatpush1.msra.mxu0 0.0
        %1607 = vmatprep.subr.mxu0 0.0
        %1608 = vmatpush1.msra.mxu0 0.0
        %1609 = vmatprep.subr.mxu0 0.0
        %1610 = vmatpush1.msra.mxu0 0.0
        %1611 = vmatprep.subr.mxu0 0.0
        %1612 = vmatpush1.msra.mxu0 0.0
        %1613 = vmatprep.subr.mxu0 0.0
        %1614 = vmatpush1.msra.mxu0 0.0
        %1615 = vmatprep.subr.mxu0 0.0
        %1616 = vmatpush1.msra.mxu0 0.0
        %1617 = vmatprep.subr.mxu0 0.0
        %1618 = vmatpush1.msra.mxu0 0.0
        %1619 = vmatprep.subr.mxu0 0.0
        %1620 = vmatpush1.msra.mxu0 0.0
        %1621 = vmatprep.subr.mxu0 0.0
        %1622 = vmatpush1.msra.mxu0 0.0
        %1623 = vmatprep.subr.mxu0 0.0
        %1624 = vmatpush1.msra.mxu0 0.0
        %1625 = vmatprep.subr.mxu0 0.0
        %1626 = vmatpush1.msra.mxu0 0.0
        %1627 = vmatprep.subr.mxu0 0.0
        %1628 = vmatpush1.msra.mxu0 0.0
        %1629 = vmatprep.subr.mxu0 0.0
        %1630 = vmatpush1.msra.mxu0 0.0
        %1631 = vmatprep.subr.mxu0 0.0
        %1632 = vmatpush1.msra.mxu0 0.0
        %1633 = vmatprep.subr.mxu0 0.0
        %1634 = vmatpush1.msra.mxu0 0.0
        %1635 = vmatprep.subr.mxu0 0.0
        %1636 = vmatpush1.msra.mxu0 0.0
        %1637 = vmatprep.mubr.f32.mxu0 0.0
        %1638 = vmatmul.mubr.f32.gmra.mrb[0].mxu0 %v1568
        %v1639 = vpop.f32.mrb[0].mxu0
        %v1640 = vadd.f32 0.0, %v1639
        %v1641 = vpop.f32.mrb[0].mxu0
        %v1642 = vadd.f32 0.0, %v1641
        %1643 = vmatprep.mubr.f32.mxu0 0.0
        %1644 = vmatmul.mubr.f32.gmra.mrb[0].mxu0 %v1571
        %v1645 = vpop.f32.mrb[0].mxu0
        %v1646 = vadd.f32 0.0, %v1645
        %v1647 = vpop.f32.mrb[0].mxu0
        %v1648 = vadd.f32 0.0, %v1647
        %1649 = vdwg.mxu0
        %1650 = vmatprep.subr.mxu0 %v1563
        %1651 = vmatpush1.msra.mxu0 %v1562
        %1652 = vmatprep.subr.mxu0 0.0
        %1653 = vmatpush1.msra.mxu0 0.0
        %1654 = vmatprep.subr.mxu0 0.0
        %1655 = vmatpush1.msra.mxu0 0.0
        %1656 = vmatprep.subr.mxu0 0.0
        %1657 = vmatpush1.msra.mxu0 0.0
        %1658 = vmatprep.subr.mxu0 0.0
        %1659 = vmatpush1.msra.mxu0 0.0
        %1660 = vmatprep.subr.mxu0 0.0
        %1661 = vmatpush1.msra.mxu0 0.0
        %1662 = vmatprep.subr.mxu0 0.0
        %1663 = vmatpush1.msra.mxu0 0.0
        %1664 = vmatprep.subr.mxu0 0.0
        %1665 = vmatpush1.msra.mxu0 0.0
        %1666 = vmatprep.subr.mxu0 0.0
        %1667 = vmatpush1.msra.mxu0 0.0
        %1668 = vmatprep.subr.mxu0 0.0
        %1669 = vmatpush1.msra.mxu0 0.0
        %1670 = vmatprep.subr.mxu0 0.0
        %1671 = vmatpush1.msra.mxu0 0.0
        %1672 = vmatprep.subr.mxu0 0.0
        %1673 = vmatpush1.msra.mxu0 0.0
        %1674 = vmatprep.subr.mxu0 0.0
        %1675 = vmatpush1.msra.mxu0 0.0
        %1676 = vmatprep.subr.mxu0 0.0
        %1677 = vmatpush1.msra.mxu0 0.0
        %1678 = vmatprep.subr.mxu0 0.0
        %1679 = vmatpush1.msra.mxu0 0.0
        %1680 = vmatprep.subr.mxu0 0.0
        %1681 = vmatpush1.msra.mxu0 0.0
        %1682 = vmatprep.subr.mxu0 0.0
        %1683 = vmatpush1.msra.mxu0 0.0
        %1684 = vmatprep.subr.mxu0 0.0
        %1685 = vmatpush1.msra.mxu0 0.0
        %1686 = vmatprep.subr.mxu0 0.0
        %1687 = vmatpush1.msra.mxu0 0.0
        %1688 = vmatprep.subr.mxu0 0.0
        %1689 = vmatpush1.msra.mxu0 0.0
        %1690 = vmatprep.subr.mxu0 0.0
        %1691 = vmatpush1.msra.mxu0 0.0
        %1692 = vmatprep.subr.mxu0 0.0
        %1693 = vmatpush1.msra.mxu0 0.0
        %1694 = vmatprep.subr.mxu0 0.0
        %1695 = vmatpush1.msra.mxu0 0.0
        %1696 = vmatprep.subr.mxu0 0.0
        %1697 = vmatpush1.msra.mxu0 0.0
        %1698 = vmatprep.subr.mxu0 0.0
        %1699 = vmatpush1.msra.mxu0 0.0
        %1700 = vmatprep.subr.mxu0 0.0
        %1701 = vmatpush1.msra.mxu0 0.0
        %1702 = vmatprep.subr.mxu0 0.0
        %1703 = vmatpush1.msra.mxu0 0.0
        %1704 = vmatprep.subr.mxu0 0.0
        %1705 = vmatpush1.msra.mxu0 0.0
        %1706 = vmatprep.subr.mxu0 0.0
        %1707 = vmatpush1.msra.mxu0 0.0
        %1708 = vmatprep.subr.mxu0 0.0
        %1709 = vmatpush1.msra.mxu0 0.0
        %1710 = vmatprep.subr.mxu0 0.0
        %1711 = vmatpush1.msra.mxu0 0.0
        %1712 = vmatprep.subr.mxu0 0.0
        %1713 = vmatpush1.msra.mxu0 0.0
        %1714 = vmatprep.mubr.f32.mxu0 0.0
        %1715 = vmatmul.mubr.f32.gmra.mrb[0].mxu0 %v1568
        %v1716 = vpop.f32.mrb[0].mxu0
        %v1717 = vadd.f32 0.0, %v1716
        %v1718 = vpop.f32.mrb[0].mxu0
        %v1719 = vadd.f32 0.0, %v1718
        %1720 = vmatprep.mubr.f32.mxu0 0.0
        %1721 = vmatmul.mubr.f32.gmra.mrb[0].mxu0 %v1571
        %v1722 = vpop.f32.mrb[0].mxu0
        %v1723 = vadd.f32 0.0, %v1722
        %v1724 = vpop.f32.mrb[0].mxu0
        %v1725 = vadd.f32 0.0, %v1724
        %1726 = vdwg.mxu0
        %v1727 = vadd.f32 %v1396, %v1640
        %v1728 = vadd.f32 %v1397, %v1642
        %v1729 = vadd.f32 %v1398, %v1717
        %v1730 = vadd.f32 %v1399, %v1719
        %v1731 = vadd.f32 %v1400, %v1646
        %v1732 = vadd.f32 %v1401, %v1648
        %v1733 = vadd.f32 %v1402, %v1723
        %v1734 = vadd.f32 %v1403, %v1725
        %v1735 = vld [vmem:[%s4] sm:$0xff]
        %v1736 = vld [vmem:[%s4 + $0x8] sm:$0xff]
        %1738 = vset.pattern.permute.xlu0 0
        %1739 = vperm.xlu0 %1738, %v1735
        %v1740 = vpop.permute.xlu0 %1739
        %1743 = vset.pattern.permute.xlu0 0
        %1744 = vperm.xlu0 %1743, %v1736
        %v1745 = vpop.permute.xlu0 %1744
        %v1747 = vadd.f32 %v1727, %v1740
        %v1748 = vadd.f32 %v1728, %v1740
        %v1749 = vadd.f32 %v1729, %v1740
        %v1750 = vadd.f32 %v1730, %v1740
        %v1751 = vadd.f32 %v1731, %v1745
        %v1752 = vadd.f32 %v1732, %v1745
        %v1753 = vadd.f32 %v1733, %v1745
        %v1754 = vadd.f32 %v1734, %v1745
        %v1755 = vxor.u32 %v1747, 2147483648
        %v1756 = vxor.u32 %v1748, 2147483648
        %v1757 = vxor.u32 %v1749, 2147483648
        %v1758 = vxor.u32 %v1750, 2147483648
        %v1759 = vxor.u32 %v1751, 2147483648
        %v1760 = vxor.u32 %v1752, 2147483648
        %v1761 = vxor.u32 %v1753, 2147483648
        %v1762 = vxor.u32 %v1754, 2147483648
        %v1763 = vmul.f32 %v1755, 1.442695
        %v1764 = vpow.pop %v1763
        %v1765 = vmul.f32 %v1756, 1.442695
        %v1766 = vpow.pop %v1765
        %v1767 = vmul.f32 %v1757, 1.442695
        %v1768 = vpow.pop %v1767
        %v1769 = vmul.f32 %v1758, 1.442695
        %v1770 = vpow.pop %v1769
        %v1771 = vmul.f32 %v1759, 1.442695
        %v1772 = vpow.pop %v1771
        %v1773 = vmul.f32 %v1760, 1.442695
        %v1774 = vpow.pop %v1773
        %v1775 = vmul.f32 %v1761, 1.442695
        %v1776 = vpow.pop %v1775
        %v1777 = vmul.f32 %v1762, 1.442695
        %v1778 = vpow.pop %v1777
        %v1779 = vadd.f32 %v1764, 1.0
        %v1780 = vadd.f32 %v1766, 1.0
        %v1781 = vadd.f32 %v1768, 1.0
        %v1782 = vadd.f32 %v1770, 1.0
        %v1783 = vadd.f32 %v1772, 1.0
        %v1784 = vadd.f32 %v1774, 1.0
        %v1785 = vadd.f32 %v1776, 1.0
        %v1786 = vadd.f32 %v1778, 1.0
        %v1787 = vrcp.pop %v1779
        %v1788 = vmul.f32 1.0, %v1787
        %v1789 = vrcp.pop %v1780
        %v1790 = vmul.f32 1.0, %v1789
        %v1791 = vrcp.pop %v1781
        %v1792 = vmul.f32 1.0, %v1791
        %v1793 = vrcp.pop %v1782
        %v1794 = vmul.f32 1.0, %v1793
        %v1795 = vrcp.pop %v1783
        %v1796 = vmul.f32 1.0, %v1795
        %v1797 = vrcp.pop %v1784
        %v1798 = vmul.f32 1.0, %v1797
        %v1799 = vrcp.pop %v1785
        %v1800 = vmul.f32 1.0, %v1799
        %v1801 = vrcp.pop %v1786
        %v1802 = vmul.f32 1.0, %v1801
        %v1803 = vmul.f32 %v1747, %v1788
        %v1804 = vmul.f32 %v1748, %v1790
        %v1805 = vmul.f32 %v1749, %v1792
        %v1806 = vmul.f32 %v1750, %v1794
        %v1807 = vmul.f32 %v1751, %v1796
        %v1808 = vmul.f32 %v1752, %v1798
        %v1809 = vmul.f32 %v1753, %v1800
        %v1810 = vmul.f32 %v1754, %v1802
        %1811 = vst [vmem:[%s242] sm:$0xff] %v1803
        %1812 = vst [vmem:[%s242 + $0x8] sm:$0xff] %v1804
        %1813 = vst [vmem:[%s242 + $0x10] sm:$0xff] %v1805
        %1814 = vst [vmem:[%s242 + $0x18] sm:$0xff] %v1806
        %1815 = vst [vmem:[%s242 + $0x20] sm:$0xff] %v1807
        %1816 = vst [vmem:[%s242 + $0x28] sm:$0xff] %v1808
        %1817 = vst [vmem:[%s242 + $0x30] sm:$0xff] %v1809
        %1818 = vst [vmem:[%s242 + $0x38] sm:$0xff] %v1810
        %s1819 = sand.u32 %s140, 1
        %s1820 = scalar_lea.sflag [#allocation4], %s1819
        %s1821 = sand.u32 %s140, 1
        %s1822 = smul.addr %s1821, 64
        %s1823 = scalar_lea.vmem [#allocation5], %s1822
        // Predicated region
        $region45: #{tpu_custom_call.1} parent=39 // pred_check
          %p1824 = pneg %p150
        $region46: #{tpu_custom_call.1} parent=39 // pred_check_branch
          %1826 = sbr.rel (%p1824) target = $region48
        $region47: #{tpu_custom_call.1} parent=39 // pred_region
          %s1827 = smul.u32 4, %s22
          %s1829 = ssub.s32 1024, 1024
          %1830 = vsyncadd %s1820, %s1829
          %s1831 = smul.addr %s1827, 128
          %s1832 = scalar_lea.hbm %s5, %s1831
          %s1833 = sshll.u32 %s1823, 4
          %s1834 = int_to_ptr.vmem [resolvable:$true] %s1833
          %1839 = dma.vmem_to_hbm [thread:$0]  %s1834, 1024, %s1832, %s1820, 512, 1024, 32
        $region48: #{tpu_custom_call.1} parent=39 // pred_fallthru
          _
      $region40: #{tpu_custom_call.1} parent=5 // pred_fallthru
        _
      %p1840 = scmp.le.s32.totalorder 2, %s17
      // Predicated region
      $region49: #{tpu_custom_call.1} parent=5 // pred_check
        %p1841 = pneg %p1840
      $region50: #{tpu_custom_call.1} parent=5 // pred_check_branch
        %1843 = sbr.rel (%p1841) target = $region52
      $region51: #{tpu_custom_call.1} parent=5 // pred_region
        %s1844 = ssub.s32 %s17, 2
        // Predicated region
        $region53: #{tpu_custom_call.1} parent=51 // pred_check
          %p1845 = pneg %p156
        $region54: #{tpu_custom_call.1} parent=51 // pred_check_branch
          %1847 = sbr.rel (%p1845) target = $region56
        $region55: #{tpu_custom_call.1} parent=51 // pred_region
          %s1848 = sand.u32 %s141, 1
          %s1849 = scalar_lea.sflag [#allocation4], %s1848
          %s1850 = sand.u32 %s141, 1
          %s1851 = smul.addr %s1850, 64
          %s1852 = scalar_lea.vmem [#allocation5], %s1851
          %1853 = dma.done %s1849, 1024
        $region56: #{tpu_custom_call.1} parent=51 // pred_fallthru
          _
      $region52: #{tpu_custom_call.1} parent=5 // pred_fallthru
        _
    $region6: #{tpu_custom_call.1} parent=1 // loop_footer
      %s21 = sadd.s32 1, %s17
    $region7: #{tpu_custom_call.1} parent=1 // loop_footer_branch
      %16 = sbr.rel target = $region3
    $region8: #{tpu_custom_call.1} parent=1 // loop_exit
      _
    %1854 = vsyncpa [#allocation3], 1
    %s1855 = scalar_lea.sflag [#allocation3], 1
    %1856 = vsyncpa %s1855, 1
    %1857 = vsyncpa [#allocation4], 1
    %s1858 = scalar_lea.sflag [#allocation4], 1
    %1859 = vsyncpa %s1858, 1

</llo_original>
